<compile_context>
chip_gen: v5e
topology: v5e:2x2
jax: 0.10.0
libtpu: 0.0.40
codegen_flags: <defaults>
</compile_context>

<pallas_src>
import jax
import jax.numpy as jnp
from jax import lax
from jax.experimental import pallas as pl
from jax.experimental.pallas import tpu as pltpu


def _round_up(x, m):
    return (x + m - 1) // m * m


def _down_block_kernel(x_ref, w1_ref, w2_ref, s1_ref, b1_ref, s2_ref, b2_ref,
                       out_ref, pad1_ref, pad2_ref):
    # x_ref   : (1, Hh, 2, Wh, 2*Cin)  one batch element, H/W pool pairs split
    # w1_ref  : (9*Cin, CP)            conv1 im2col weights (bf16)
    # w2_ref  : (9, CP, CP)            conv2 per-tap weights (bf16)
    # s*/b*   : (1, CP)                folded BN scale / bias (f32)
    # out_ref : (1, M, CP)             M = Hh*Wp rows (Wp-wrap cols are junk)
    # pad1_ref: (Mbuf, Cin)  f32       flat zero-padded pooled image
    # pad2_ref: (Mbuf, CP)   f32       flat zero-padded conv1 output
    _, Hh, _, Wh, two_cin = x_ref.shape
    Cin = two_cin // 2
    _, M, CP = out_ref.shape
    Wp = Wh + 2
    Mbuf = pad1_ref.shape[0]
    top = Wp + 1                      # rows [0, top) are the leading pad strip
    f32 = jnp.float32
    bf16 = jnp.bfloat16

    # ---- MaxPool2d(2, 2): H pairs are a leading dim, W pairs live in lanes ----
    x4 = x_ref[0]                                        # (Hh, 2, Wh, 2*Cin)
    xh = jnp.maximum(x4[:, 0], x4[:, 1])                 # pool over H
    xm = jnp.maximum(xh[:, :, :Cin], xh[:, :, Cin:])     # pool over W -> (Hh, Wh, Cin)

    # ---- build flat zero-padded pooled image (row-major (Hp, Wp), Cin lanes) ----
    # Zero only the invariant border strips; the interior rows are overwritten.
    pad1_ref[pl.ds(0, top), :] = jnp.zeros((top, Cin), f32)
    pad1_ref[pl.ds(top + M, Mbuf - top - M), :] = jnp.zeros((Mbuf - top - M, Cin), f32)
    # Append the 2 pad columns so each row store also writes its right/left pads.
    xmw = jnp.concatenate([xm, jnp.zeros((Hh, 2, Cin), f32)], axis=1)  # (Hh, Wp, Cin)
    for i in range(Hh):
        pad1_ref[pl.ds(top + i * Wp, Wp), :] = xmw[i]

    # ---- conv1: single im2col matmul  (M, 9*Cin) @ (9*Cin, CP) ----
    patches = jnp.concatenate(
        [pad1_ref[pl.ds(ky * Wp + kx, M), :] for ky in range(3) for kx in range(3)],
        axis=1)                                          # (M, 9*Cin)
    acc1 = jnp.dot(patches.astype(bf16), w1_ref[...],
                   preferred_element_type=f32)           # (M, CP) f32
    y1 = jnp.maximum(acc1 * s1_ref[...] + b1_ref[...], 0.0)

    # Rows with column index >= Wh are Wp-wrap junk; zero them so the single
    # contiguous store below also writes conv2's zero padding correctly.
    rows = lax.broadcasted_iota(jnp.int32, (M, 1), 0)
    y1 = jnp.where(rows % Wp < Wh, y1, 0.0)

    # ---- flat zero-padded conv1 output for conv2 ----
    pad2_ref[pl.ds(0, top), :] = jnp.zeros((top, CP), f32)
    pad2_ref[pl.ds(top + M, Mbuf - top - M), :] = jnp.zeros((Mbuf - top - M, CP), f32)
    pad2_ref[pl.ds(top, M), :] = y1                      # one dense (M, CP) store

    # ---- conv2: 9 accumulating matmuls, each (M, CP) @ (CP, CP) ----
    acc2 = jnp.zeros((M, CP), f32)
    for t in range(9):
        ky, kx = t // 3, t % 3
        acc2 = acc2 + jnp.dot(pad2_ref[pl.ds(ky * Wp + kx, M), :].astype(bf16),
                              w2_ref[t], preferred_element_type=f32)
    y2 = jnp.maximum(acc2 * s2_ref[...] + b2_ref[...], 0.0)

    out_ref[0] = y2.astype(out_ref.dtype)                # lane-dense (M, 128) store


def down_block_pallas(x_nchw, w1_oihw, cb1, g1, be1, m1, v1,
                      w2_oihw, cb2, g2, be2, m2, v2, eps=1e-5):
    """x_nchw: (N, Cin, H, W) f32 -> (N, Cout, H//2, W//2) f32."""
    N, Cin, H, W = x_nchw.shape
    Cout = w1_oihw.shape[0]
    assert H % 2 == 0 and W % 2 == 0
    Hh, Wh = H // 2, W // 2
    Wp = Wh + 2
    M = Hh * Wp
    CP = _round_up(Cout, 128)
    Mbuf = _round_up(M + 2 * Wp + 2, 8)   # room for the (ky,kx)=(2,2) tap slice

    # NCHW -> NHWC -> (N, Hh, 2, Wh, 2*Cin): pure layout plumbing in the wrapper.
    x = jnp.transpose(x_nchw, (0, 2, 3, 1)).reshape(N, Hh, 2, Wh, 2 * Cin)
    x = x.astype(jnp.float32)

    # Weights: OIHW -> HWIO -> im2col / per-tap layout, channel-padded, bf16.
    w1_hwio = jnp.transpose(w1_oihw, (2, 3, 1, 0))                    # (3,3,Cin,Cout)
    w1_mat = jnp.pad(w1_hwio.reshape(9 * Cin, Cout),
                     ((0, 0), (0, CP - Cout))).astype(jnp.bfloat16)   # (9*Cin, CP)
    w2_hwio = jnp.transpose(w2_oihw, (2, 3, 1, 0))                    # (3,3,Cout,Cout)
    w2_stack = jnp.pad(w2_hwio, ((0, 0), (0, 0),
                                 (0, CP - Cout), (0, CP - Cout)))
    w2_stack = w2_stack.reshape(9, CP, CP).astype(jnp.bfloat16)       # (9, CP, CP)

    # Fold conv bias + BatchNorm (eval mode) into per-channel scale / bias.
    def fold(cb, g, be, mu, var):
        s = g / jnp.sqrt(var + eps)
        b = be + s * (cb - mu)
        s = jnp.pad(s, (0, CP - Cout)).reshape(1, CP).astype(jnp.float32)
        b = jnp.pad(b, (0, CP - Cout)).reshape(1, CP).astype(jnp.float32)
        return s, b
    s1, b1 = fold(cb1, g1, be1, m1, v1)
    s2, b2 = fold(cb2, g2, be2, m2, v2)

    out_flat = pl.pallas_call(
        _down_block_kernel,
        out_shape=jax.ShapeDtypeStruct((N, M, CP), jnp.float32),
        grid_spec=pltpu.PrefetchScalarGridSpec(
            num_scalar_prefetch=0,
            grid=(N,),
            in_specs=[
                pl.BlockSpec((1, Hh, 2, Wh, 2 * Cin), lambda n: (n, 0, 0, 0, 0)),
                pl.BlockSpec((9 * Cin, CP), lambda n: (0, 0)),
                pl.BlockSpec((9, CP, CP), lambda n: (0, 0, 0)),
                pl.BlockSpec((1, CP), lambda n: (0, 0)),
                pl.BlockSpec((1, CP), lambda n: (0, 0)),
                pl.BlockSpec((1, CP), lambda n: (0, 0)),
                pl.BlockSpec((1, CP), lambda n: (0, 0)),
            ],
            out_specs=pl.BlockSpec((1, M, CP), lambda n: (n, 0, 0)),
            scratch_shapes=[pltpu.VMEM((Mbuf, Cin), jnp.float32),
                            pltpu.VMEM((Mbuf, CP), jnp.float32)],
        ),
        compiler_params=pltpu.CompilerParams(
            dimension_semantics=("parallel",)),   # batch is independent (v7x 2 TCs)
    )(x, w1_mat, w2_stack, s1, b1, s2, b2)

    # (N, Hh*Wp, CP) -> drop Wp-wrap columns and channel padding -> NCHW.
    out = out_flat.reshape(N, Hh, Wp, CP)[:, :, :Wh, :Cout]
    return jnp.transpose(out, (0, 3, 1, 2))


def _reference_forward(x_nchw, w1_hwio, cb1, g1, be1, m1, v1,
                       w2_hwio, cb2, g2, be2, m2, v2, eps=1e-5):
    """Pure-JAX f32 reference of down_block (maxpool 2x2 + conv->BN(eval)->ReLU x2)."""
    x = jnp.transpose(x_nchw, (0, 2, 3, 1))                     # NHWC
    N, H, W, C = x.shape
    x = jnp.max(x.reshape(N, H // 2, 2, W // 2, 2, C), axis=(2, 4))

    def block(y, w, cb, g, be, mu, var):
        y = lax.conv_general_dilated(
            y, w, window_strides=(1, 1), padding=((1, 1), (1, 1)),
            dimension_numbers=('NHWC', 'HWIO', 'NHWC')) + cb
        y = (y - mu) / jnp.sqrt(var + eps) * g + be
        return jnp.maximum(y, 0.0)

    y = block(x, w1_hwio, cb1, g1, be1, m1, v1)
    y = block(y, w2_hwio, cb2, g2, be2, m2, v2)
    return jnp.transpose(y, (0, 3, 1, 2))


if __name__ == "__main__":
    key = jax.random.PRNGKey(0)
    in_channels, out_channels = 4, 8
    N, H, W = 2, 16, 16

    keys = jax.random.split(key, 16)
    x = jax.random.normal(keys[0], (N, in_channels, H, W), jnp.float32)

    # Conv weights in PyTorch layout (Cout, Cin, kh, kw)
    w1_oihw = 0.1 * jax.random.normal(keys[1], (out_channels, in_channels, 3, 3), jnp.float32)
    cb1 = 0.1 * jax.random.normal(keys[2], (out_channels,), jnp.float32)
    w2_oihw = 0.1 * jax.random.normal(keys[3], (out_channels, out_channels, 3, 3), jnp.float32)
    cb2 = 0.1 * jax.random.normal(keys[4], (out_channels,), jnp.float32)

    # BatchNorm (eval mode) parameters
    g1 = 1.0 + 0.1 * jax.random.normal(keys[5], (out_channels,), jnp.float32)
    be1 = 0.1 * jax.random.normal(keys[6], (out_channels,), jnp.float32)
    m1 = 0.1 * jax.random.normal(keys[7], (out_channels,), jnp.float32)
    v1 = 0.5 + jax.random.uniform(keys[8], (out_channels,), jnp.float32)
    g2 = 1.0 + 0.1 * jax.random.normal(keys[9], (out_channels,), jnp.float32)
    be2 = 0.1 * jax.random.normal(keys[10], (out_channels,), jnp.float32)
    m2 = 0.1 * jax.random.normal(keys[11], (out_channels,), jnp.float32)
    v2 = 0.5 + jax.random.uniform(keys[12], (out_channels,), jnp.float32)

    out = down_block_pallas(x, w1_oihw, cb1, g1, be1, m1, v1,
                            w2_oihw, cb2, g2, be2, m2, v2)
    out = jax.block_until_ready(out)

    w1_hwio = jnp.transpose(w1_oihw, (2, 3, 1, 0))
    w2_hwio = jnp.transpose(w2_oihw, (2, 3, 1, 0))
    ref = _reference_forward(x, w1_hwio, cb1, g1, be1, m1, v1,
                             w2_hwio, cb2, g2, be2, m2, v2)
    ref = jax.block_until_ready(ref)

    assert out.shape == (N, out_channels, H // 2, W // 2), out.shape
    max_err = float(jnp.max(jnp.abs(out - ref)))
    # bf16 MXU operands (f32 accumulation) -> loosened tolerance vs f32 reference.
    assert jnp.allclose(out, ref, rtol=5e-2, atol=6e-2), f"max abs err {max_err}"
    print("KERNEL_OK")
</pallas_src>

<mosaic_0001>
module attributes {stable_mosaic.version = 11 : i64} {
  func.func @_down_block_kernel(%arg0: i32, %arg1: memref<1x8x2x8x8xf32, #tpu.memory_space<vmem>>, %arg2: memref<36x128xbf16, #tpu.memory_space<vmem>>, %arg3: memref<9x128x128xbf16, #tpu.memory_space<vmem>>, %arg4: memref<1x128xf32, #tpu.memory_space<vmem>>, %arg5: memref<1x128xf32, #tpu.memory_space<vmem>>, %arg6: memref<1x128xf32, #tpu.memory_space<vmem>>, %arg7: memref<1x128xf32, #tpu.memory_space<vmem>>, %arg8: memref<1x80x128xf32, #tpu.memory_space<vmem>>, %arg9: memref<104x4xf32, #tpu.memory_space<vmem>>, %arg10: memref<104x128xf32, #tpu.memory_space<vmem>>) attributes {dimension_semantics = [#tpu.dimension_semantics<parallel>], iteration_bounds = array<i64: 2>, scalar_prefetch = 0 : i64, scratch_operands = 2 : i64, tpu.core_type = #tpu.core_type<tc>, window_params = [{transform_indices = @transform_0, window_bounds = array<i64: 1, 8, 2, 8, 8>}, {pipeline_mode = #tpu.pipeline_mode<synchronous>, transform_indices = @transform_1, window_bounds = array<i64: 36, 128>}, {pipeline_mode = #tpu.pipeline_mode<synchronous>, transform_indices = @transform_2, window_bounds = array<i64: 9, 128, 128>}, {pipeline_mode = #tpu.pipeline_mode<synchronous>, transform_indices = @transform_3, window_bounds = array<i64: 1, 128>}, {pipeline_mode = #tpu.pipeline_mode<synchronous>, transform_indices = @transform_4, window_bounds = array<i64: 1, 128>}, {pipeline_mode = #tpu.pipeline_mode<synchronous>, transform_indices = @transform_5, window_bounds = array<i64: 1, 128>}, {pipeline_mode = #tpu.pipeline_mode<synchronous>, transform_indices = @transform_6, window_bounds = array<i64: 1, 128>}, {transform_indices = @transform_7, window_bounds = array<i64: 1, 80, 128>}]} {
    %c0 = arith.constant 0 : index
    %c0_0 = arith.constant 0 : index
    %c0_1 = arith.constant 0 : index
    %c0_2 = arith.constant 0 : index
    %c0_3 = arith.constant 0 : index
    %0 = vector.load %arg1[%c0, %c0_0, %c0_1, %c0_2, %c0_3] : memref<1x8x2x8x8xf32, #tpu.memory_space<vmem>>, vector<1x8x2x8x8xf32>
    %1 = vector.shape_cast %0 : vector<1x8x2x8x8xf32> to vector<8x2x8x8xf32>
    %2 = vector.extract_strided_slice %1 {offsets = [0, 0, 0, 0], sizes = [8, 1, 8, 8], strides = [1, 1, 1, 1]} : vector<8x2x8x8xf32> to vector<8x1x8x8xf32>
    %3 = vector.shape_cast %2 : vector<8x1x8x8xf32> to vector<8x8x8xf32>
    %4 = vector.extract_strided_slice %1 {offsets = [0, 1, 0, 0], sizes = [8, 1, 8, 8], strides = [1, 1, 1, 1]} : vector<8x2x8x8xf32> to vector<8x1x8x8xf32>
    %5 = vector.shape_cast %4 : vector<8x1x8x8xf32> to vector<8x8x8xf32>
    %6 = arith.maximumf %3, %5 : vector<8x8x8xf32>
    %7 = vector.extract_strided_slice %6 {offsets = [0, 0, 0], sizes = [8, 8, 4], strides = [1, 1, 1]} : vector<8x8x8xf32> to vector<8x8x4xf32>
    %8 = vector.extract_strided_slice %6 {offsets = [0, 0, 4], sizes = [8, 8, 4], strides = [1, 1, 1]} : vector<8x8x8xf32> to vector<8x8x4xf32>
    %9 = arith.maximumf %7, %8 : vector<8x8x4xf32>
    %cst = arith.constant 0.000000e+00 : f32
    %10 = vector.broadcast %cst : f32 to vector<11x4xf32>
    %c0_4 = arith.constant 0 : index
    %c0_5 = arith.constant 0 : index
    %11 = vector.load %arg9[%c0_4, %c0_5] : memref<104x4xf32, #tpu.memory_space<vmem>>, vector<11x4xf32>
    tpu.vector_store %arg9[%c0_4, %c0_5], %10 {strides = array<i32>} : memref<104x4xf32, #tpu.memory_space<vmem>>, vector<11x4xf32>,
    %cst_6 = arith.constant 0.000000e+00 : f32
    %12 = vector.broadcast %cst_6 : f32 to vector<13x4xf32>
    %c91 = arith.constant 91 : index
    %c0_7 = arith.constant 0 : index
    %13 = vector.load %arg9[%c91, %c0_7] : memref<104x4xf32, #tpu.memory_space<vmem>>, vector<13x4xf32>
    tpu.vector_store %arg9[%c91, %c0_7], %12 {strides = array<i32>} : memref<104x4xf32, #tpu.memory_space<vmem>>, vector<13x4xf32>,
    %cst_8 = arith.constant 0.000000e+00 : f32
    %14 = vector.broadcast %cst_8 : f32 to vector<8x2x4xf32>
    %15 = tpu.concatenate %9, %14 in 1 : vector<8x8x4xf32>, vector<8x2x4xf32> -> vector<8x10x4xf32>
    %16 = vector.extract_strided_slice %15 {offsets = [0, 0, 0], sizes = [1, 10, 4], strides = [1, 1, 1]} : vector<8x10x4xf32> to vector<1x10x4xf32>
    %17 = vector.shape_cast %16 : vector<1x10x4xf32> to vector<10x4xf32>
    %c11 = arith.constant 11 : index
    %c0_9 = arith.constant 0 : index
    %18 = vector.load %arg9[%c11, %c0_9] : memref<104x4xf32, #tpu.memory_space<vmem>>, vector<10x4xf32>
    tpu.vector_store %arg9[%c11, %c0_9], %17 {strides = array<i32>} : memref<104x4xf32, #tpu.memory_space<vmem>>, vector<10x4xf32>,
    %19 = vector.extract_strided_slice %15 {offsets = [1, 0, 0], sizes = [1, 10, 4], strides = [1, 1, 1]} : vector<8x10x4xf32> to vector<1x10x4xf32>
    %20 = vector.shape_cast %19 : vector<1x10x4xf32> to vector<10x4xf32>
    %c21 = arith.constant 21 : index
    %c0_10 = arith.constant 0 : index
    %21 = vector.load %arg9[%c21, %c0_10] : memref<104x4xf32, #tpu.memory_space<vmem>>, vector<10x4xf32>
    tpu.vector_store %arg9[%c21, %c0_10], %20 {strides = array<i32>} : memref<104x4xf32, #tpu.memory_space<vmem>>, vector<10x4xf32>,
    %22 = vector.extract_strided_slice %15 {offsets = [2, 0, 0], sizes = [1, 10, 4], strides = [1, 1, 1]} : vector<8x10x4xf32> to vector<1x10x4xf32>
    %23 = vector.shape_cast %22 : vector<1x10x4xf32> to vector<10x4xf32>
    %c31 = arith.constant 31 : index
    %c0_11 = arith.constant 0 : index
    %24 = vector.load %arg9[%c31, %c0_11] : memref<104x4xf32, #tpu.memory_space<vmem>>, vector<10x4xf32>
    tpu.vector_store %arg9[%c31, %c0_11], %23 {strides = array<i32>} : memref<104x4xf32, #tpu.memory_space<vmem>>, vector<10x4xf32>,
    %25 = vector.extract_strided_slice %15 {offsets = [3, 0, 0], sizes = [1, 10, 4], strides = [1, 1, 1]} : vector<8x10x4xf32> to vector<1x10x4xf32>
    %26 = vector.shape_cast %25 : vector<1x10x4xf32> to vector<10x4xf32>
    %c41 = arith.constant 41 : index
    %c0_12 = arith.constant 0 : index
    %27 = vector.load %arg9[%c41, %c0_12] : memref<104x4xf32, #tpu.memory_space<vmem>>, vector<10x4xf32>
    tpu.vector_store %arg9[%c41, %c0_12], %26 {strides = array<i32>} : memref<104x4xf32, #tpu.memory_space<vmem>>, vector<10x4xf32>,
    %28 = vector.extract_strided_slice %15 {offsets = [4, 0, 0], sizes = [1, 10, 4], strides = [1, 1, 1]} : vector<8x10x4xf32> to vector<1x10x4xf32>
    %29 = vector.shape_cast %28 : vector<1x10x4xf32> to vector<10x4xf32>
    %c51 = arith.constant 51 : index
    %c0_13 = arith.constant 0 : index
    %30 = vector.load %arg9[%c51, %c0_13] : memref<104x4xf32, #tpu.memory_space<vmem>>, vector<10x4xf32>
    tpu.vector_store %arg9[%c51, %c0_13], %29 {strides = array<i32>} : memref<104x4xf32, #tpu.memory_space<vmem>>, vector<10x4xf32>,
    %31 = vector.extract_strided_slice %15 {offsets = [5, 0, 0], sizes = [1, 10, 4], strides = [1, 1, 1]} : vector<8x10x4xf32> to vector<1x10x4xf32>
    %32 = vector.shape_cast %31 : vector<1x10x4xf32> to vector<10x4xf32>
    %c61 = arith.constant 61 : index
    %c0_14 = arith.constant 0 : index
    %33 = vector.load %arg9[%c61, %c0_14] : memref<104x4xf32, #tpu.memory_space<vmem>>, vector<10x4xf32>
    tpu.vector_store %arg9[%c61, %c0_14], %32 {strides = array<i32>} : memref<104x4xf32, #tpu.memory_space<vmem>>, vector<10x4xf32>,
    %34 = vector.extract_strided_slice %15 {offsets = [6, 0, 0], sizes = [1, 10, 4], strides = [1, 1, 1]} : vector<8x10x4xf32> to vector<1x10x4xf32>
    %35 = vector.shape_cast %34 : vector<1x10x4xf32> to vector<10x4xf32>
    %c71 = arith.constant 71 : index
    %c0_15 = arith.constant 0 : index
    %36 = vector.load %arg9[%c71, %c0_15] : memref<104x4xf32, #tpu.memory_space<vmem>>, vector<10x4xf32>
    tpu.vector_store %arg9[%c71, %c0_15], %35 {strides = array<i32>} : memref<104x4xf32, #tpu.memory_space<vmem>>, vector<10x4xf32>,
    %37 = vector.extract_strided_slice %15 {offsets = [7, 0, 0], sizes = [1, 10, 4], strides = [1, 1, 1]} : vector<8x10x4xf32> to vector<1x10x4xf32>
    %38 = vector.shape_cast %37 : vector<1x10x4xf32> to vector<10x4xf32>
    %c81 = arith.constant 81 : index
    %c0_16 = arith.constant 0 : index
    %39 = vector.load %arg9[%c81, %c0_16] : memref<104x4xf32, #tpu.memory_space<vmem>>, vector<10x4xf32>
    tpu.vector_store %arg9[%c81, %c0_16], %38 {strides = array<i32>} : memref<104x4xf32, #tpu.memory_space<vmem>>, vector<10x4xf32>,
    %c0_17 = arith.constant 0 : index
    %c0_18 = arith.constant 0 : index
    %40 = vector.load %arg9[%c0_17, %c0_18] : memref<104x4xf32, #tpu.memory_space<vmem>>, vector<80x4xf32>
    %c1 = arith.constant 1 : index
    %c0_19 = arith.constant 0 : index
    %41 = vector.load %arg9[%c1, %c0_19] : memref<104x4xf32, #tpu.memory_space<vmem>>, vector<80x4xf32>
    %c2 = arith.constant 2 : index
    %c0_20 = arith.constant 0 : index
    %42 = vector.load %arg9[%c2, %c0_20] : memref<104x4xf32, #tpu.memory_space<vmem>>, vector<80x4xf32>
    %c10 = arith.constant 10 : index
    %c0_21 = arith.constant 0 : index
    %43 = vector.load %arg9[%c10, %c0_21] : memref<104x4xf32, #tpu.memory_space<vmem>>, vector<80x4xf32>
    %c11_22 = arith.constant 11 : index
    %c0_23 = arith.constant 0 : index
    %44 = vector.load %arg9[%c11_22, %c0_23] : memref<104x4xf32, #tpu.memory_space<vmem>>, vector<80x4xf32>
    %c12 = arith.constant 12 : index
    %c0_24 = arith.constant 0 : index
    %45 = vector.load %arg9[%c12, %c0_24] : memref<104x4xf32, #tpu.memory_space<vmem>>, vector<80x4xf32>
    %c20 = arith.constant 20 : index
    %c0_25 = arith.constant 0 : index
    %46 = vector.load %arg9[%c20, %c0_25] : memref<104x4xf32, #tpu.memory_space<vmem>>, vector<80x4xf32>
    %c21_26 = arith.constant 21 : index
    %c0_27 = arith.constant 0 : index
    %47 = vector.load %arg9[%c21_26, %c0_27] : memref<104x4xf32, #tpu.memory_space<vmem>>, vector<80x4xf32>
    %c22 = arith.constant 22 : index
    %c0_28 = arith.constant 0 : index
    %48 = vector.load %arg9[%c22, %c0_28] : memref<104x4xf32, #tpu.memory_space<vmem>>, vector<80x4xf32>
    %49 = tpu.concatenate %40, %41, %42, %43, %44, %45, %46, %47, %48 in 1 : vector<80x4xf32>, vector<80x4xf32>, vector<80x4xf32>, vector<80x4xf32>, vector<80x4xf32>, vector<80x4xf32>, vector<80x4xf32>, vector<80x4xf32>, vector<80x4xf32> -> vector<80x36xf32>
    %50 = arith.truncf %49 : vector<80x36xf32> to vector<80x36xbf16>
    %c0_29 = arith.constant 0 : index
    %c0_30 = arith.constant 0 : index
    %51 = vector.load %arg2[%c0_29, %c0_30] : memref<36x128xbf16, #tpu.memory_space<vmem>>, vector<36x128xbf16>
    %cst_31 = arith.constant dense<0.000000e+00> : vector<80x128xf32>
    %52 = tpu.matmul %50, %51, %cst_31 {dimension_numbers = #tpu.dot_dimension_numbers<[1], [0], [0], [1], [0, 0, 1, 1], [], []>} : vector<80x36xbf16>, vector<36x128xbf16>, vector<80x128xf32> -> vector<80x128xf32>
    %c0_32 = arith.constant 0 : index
    %c0_33 = arith.constant 0 : index
    %53 = vector.load %arg4[%c0_32, %c0_33] : memref<1x128xf32, #tpu.memory_space<vmem>>, vector<1x128xf32>
    %54 = vector.broadcast %53 : vector<1x128xf32> to vector<80x128xf32>
    %55 = arith.mulf %52, %54 : vector<80x128xf32>
    %c0_34 = arith.constant 0 : index
    %c0_35 = arith.constant 0 : index
    %56 = vector.load %arg5[%c0_34, %c0_35] : memref<1x128xf32, #tpu.memory_space<vmem>>, vector<1x128xf32>
    %57 = vector.broadcast %56 : vector<1x128xf32> to vector<80x128xf32>
    %58 = arith.addf %55, %57 : vector<80x128xf32>
    %cst_36 = arith.constant 0.000000e+00 : f32
    %59 = vector.broadcast %cst_36 : f32 to vector<80x128xf32>
    %60 = arith.maximumf %58, %59 : vector<80x128xf32>
    %61 = tpu.iota {dimensions = array<i32: 0>} : vector<80x1xi32>
    %c10_i32 = arith.constant 10 : i32
    %c0_i32 = arith.constant 0 : i32
    %62 = arith.cmpi eq, %c10_i32, %c0_i32 : i32
    %c1_i32 = arith.constant 1 : i32
    %63 = arith.select %62, %c1_i32, %c10_i32 : i32
    %64 = vector.broadcast %63 : i32 to vector<80x1xi32>
    %65 = arith.remsi %61, %64 : vector<80x1xi32>
    %c0_i32_37 = arith.constant 0 : i32
    %66 = vector.broadcast %c0_i32_37 : i32 to vector<80x1xi32>
    %67 = arith.cmpi ne, %65, %66 : vector<80x1xi32>
    %c0_i32_38 = arith.constant 0 : i32
    %68 = vector.broadcast %c0_i32_38 : i32 to vector<80x1xi32>
    %69 = arith.cmpi slt, %65, %68 : vector<80x1xi32>
    %c0_i32_39 = arith.constant 0 : i32
    %70 = arith.cmpi slt, %63, %c0_i32_39 : i32
    %71 = vector.broadcast %70 : i1 to vector<80x1xi1>
    %72 = vector.broadcast %71 : vector<80x1xi1> to vector<80x1xi1>
    %73 = arith.xori %69, %72 : vector<80x1xi1>
    %74 = arith.andi %73, %67 : vector<80x1xi1>
    %75 = vector.broadcast %63 : i32 to vector<80x1xi32>
    %76 = arith.addi %65, %75 : vector<80x1xi32>
    %77 = arith.select %74, %76, %65 : vector<80x1xi1>, vector<80x1xi32>
    %c8_i32 = arith.constant 8 : i32
    %78 = vector.broadcast %c8_i32 : i32 to vector<80x1xi32>
    %79 = arith.cmpi slt, %77, %78 : vector<80x1xi32>
    %cst_40 = arith.constant 0.000000e+00 : f32
    %80 = vector.shape_cast %79 : vector<80x1xi1> to vector<80x1xi1>
    %81 = vector.broadcast %80 : vector<80x1xi1> to vector<80x128xi1>
    %82 = vector.broadcast %cst_40 : f32 to vector<80x128xf32>
    %83 = arith.select %81, %60, %82 : vector<80x128xi1>, vector<80x128xf32>
    %cst_41 = arith.constant 0.000000e+00 : f32
    %84 = vector.broadcast %cst_41 : f32 to vector<11x128xf32>
    %c0_42 = arith.constant 0 : index
    %c0_43 = arith.constant 0 : index
    %85 = vector.load %arg10[%c0_42, %c0_43] : memref<104x128xf32, #tpu.memory_space<vmem>>, vector<11x128xf32>
    tpu.vector_store %arg10[%c0_42, %c0_43], %84 {strides = array<i32>} : memref<104x128xf32, #tpu.memory_space<vmem>>, vector<11x128xf32>,
    %cst_44 = arith.constant 0.000000e+00 : f32
    %86 = vector.broadcast %cst_44 : f32 to vector<13x128xf32>
    %c91_45 = arith.constant 91 : index
    %c0_46 = arith.constant 0 : index
    %87 = vector.load %arg10[%c91_45, %c0_46] : memref<104x128xf32, #tpu.memory_space<vmem>>, vector<13x128xf32>
    tpu.vector_store %arg10[%c91_45, %c0_46], %86 {strides = array<i32>} : memref<104x128xf32, #tpu.memory_space<vmem>>, vector<13x128xf32>,
    %c11_47 = arith.constant 11 : index
    %c0_48 = arith.constant 0 : index
    %88 = vector.load %arg10[%c11_47, %c0_48] : memref<104x128xf32, #tpu.memory_space<vmem>>, vector<80x128xf32>
    tpu.vector_store %arg10[%c11_47, %c0_48], %83 {strides = array<i32>} : memref<104x128xf32, #tpu.memory_space<vmem>>, vector<80x128xf32>,
    %cst_49 = arith.constant 0.000000e+00 : f32
    %89 = vector.broadcast %cst_49 : f32 to vector<80x128xf32>
    %c0_50 = arith.constant 0 : index
    %c0_51 = arith.constant 0 : index
    %90 = vector.load %arg10[%c0_50, %c0_51] : memref<104x128xf32, #tpu.memory_space<vmem>>, vector<80x128xf32>
    %91 = arith.truncf %90 : vector<80x128xf32> to vector<80x128xbf16>
    %c0_52 = arith.constant 0 : index
    %c0_53 = arith.constant 0 : index
    %c0_54 = arith.constant 0 : index
    %92 = vector.load %arg3[%c0_52, %c0_53, %c0_54] : memref<9x128x128xbf16, #tpu.memory_space<vmem>>, vector<1x128x128xbf16>
    %93 = vector.shape_cast %92 : vector<1x128x128xbf16> to vector<128x128xbf16>
    %cst_55 = arith.constant dense<0.000000e+00> : vector<80x128xf32>
    %94 = tpu.matmul %91, %93, %cst_55 {dimension_numbers = #tpu.dot_dimension_numbers<[1], [0], [0], [1], [0, 0, 1, 1], [], []>} : vector<80x128xbf16>, vector<128x128xbf16>, vector<80x128xf32> -> vector<80x128xf32>
    %95 = arith.addf %89, %94 : vector<80x128xf32>
    %c1_56 = arith.constant 1 : index
    %c0_57 = arith.constant 0 : index
    %96 = vector.load %arg10[%c1_56, %c0_57] : memref<104x128xf32, #tpu.memory_space<vmem>>, vector<80x128xf32>
    %97 = arith.truncf %96 : vector<80x128xf32> to vector<80x128xbf16>
    %c1_58 = arith.constant 1 : index
    %c0_59 = arith.constant 0 : index
    %c0_60 = arith.constant 0 : index
    %98 = vector.load %arg3[%c1_58, %c0_59, %c0_60] : memref<9x128x128xbf16, #tpu.memory_space<vmem>>, vector<1x128x128xbf16>
    %99 = vector.shape_cast %98 : vector<1x128x128xbf16> to vector<128x128xbf16>
    %cst_61 = arith.constant dense<0.000000e+00> : vector<80x128xf32>
    %100 = tpu.matmul %97, %99, %cst_61 {dimension_numbers = #tpu.dot_dimension_numbers<[1], [0], [0], [1], [0, 0, 1, 1], [], []>} : vector<80x128xbf16>, vector<128x128xbf16>, vector<80x128xf32> -> vector<80x128xf32>
    %101 = arith.addf %95, %100 : vector<80x128xf32>
    %c2_62 = arith.constant 2 : index
    %c0_63 = arith.constant 0 : index
    %102 = vector.load %arg10[%c2_62, %c0_63] : memref<104x128xf32, #tpu.memory_space<vmem>>, vector<80x128xf32>
    %103 = arith.truncf %102 : vector<80x128xf32> to vector<80x128xbf16>
    %c2_64 = arith.constant 2 : index
    %c0_65 = arith.constant 0 : index
    %c0_66 = arith.constant 0 : index
    %104 = vector.load %arg3[%c2_64, %c0_65, %c0_66] : memref<9x128x128xbf16, #tpu.memory_space<vmem>>, vector<1x128x128xbf16>
    %105 = vector.shape_cast %104 : vector<1x128x128xbf16> to vector<128x128xbf16>
    %cst_67 = arith.constant dense<0.000000e+00> : vector<80x128xf32>
    %106 = tpu.matmul %103, %105, %cst_67 {dimension_numbers = #tpu.dot_dimension_numbers<[1], [0], [0], [1], [0, 0, 1, 1], [], []>} : vector<80x128xbf16>, vector<128x128xbf16>, vector<80x128xf32> -> vector<80x128xf32>
    %107 = arith.addf %101, %106 : vector<80x128xf32>
    %c10_68 = arith.constant 10 : index
    %c0_69 = arith.constant 0 : index
    %108 = vector.load %arg10[%c10_68, %c0_69] : memref<104x128xf32, #tpu.memory_space<vmem>>, vector<80x128xf32>
    %109 = arith.truncf %108 : vector<80x128xf32> to vector<80x128xbf16>
    %c3 = arith.constant 3 : index
    %c0_70 = arith.constant 0 : index
    %c0_71 = arith.constant 0 : index
    %110 = vector.load %arg3[%c3, %c0_70, %c0_71] : memref<9x128x128xbf16, #tpu.memory_space<vmem>>, vector<1x128x128xbf16>
    %111 = vector.shape_cast %110 : vector<1x128x128xbf16> to vector<128x128xbf16>
    %cst_72 = arith.constant dense<0.000000e+00> : vector<80x128xf32>
    %112 = tpu.matmul %109, %111, %cst_72 {dimension_numbers = #tpu.dot_dimension_numbers<[1], [0], [0], [1], [0, 0, 1, 1], [], []>} : vector<80x128xbf16>, vector<128x128xbf16>, vector<80x128xf32> -> vector<80x128xf32>
    %113 = arith.addf %107, %112 : vector<80x128xf32>
    %c11_73 = arith.constant 11 : index
    %c0_74 = arith.constant 0 : index
    %114 = vector.load %arg10[%c11_73, %c0_74] : memref<104x128xf32, #tpu.memory_space<vmem>>, vector<80x128xf32>
    %115 = arith.truncf %114 : vector<80x128xf32> to vector<80x128xbf16>
    %c4 = arith.constant 4 : index
    %c0_75 = arith.constant 0 : index
    %c0_76 = arith.constant 0 : index
    %116 = vector.load %arg3[%c4, %c0_75, %c0_76] : memref<9x128x128xbf16, #tpu.memory_space<vmem>>, vector<1x128x128xbf16>
    %117 = vector.shape_cast %116 : vector<1x128x128xbf16> to vector<128x128xbf16>
    %cst_77 = arith.constant dense<0.000000e+00> : vector<80x128xf32>
    %118 = tpu.matmul %115, %117, %cst_77 {dimension_numbers = #tpu.dot_dimension_numbers<[1], [0], [0], [1], [0, 0, 1, 1], [], []>} : vector<80x128xbf16>, vector<128x128xbf16>, vector<80x128xf32> -> vector<80x128xf32>
    %119 = arith.addf %113, %118 : vector<80x128xf32>
    %c12_78 = arith.constant 12 : index
    %c0_79 = arith.constant 0 : index
    %120 = vector.load %arg10[%c12_78, %c0_79] : memref<104x128xf32, #tpu.memory_space<vmem>>, vector<80x128xf32>
    %121 = arith.truncf %120 : vector<80x128xf32> to vector<80x128xbf16>
    %c5 = arith.constant 5 : index
    %c0_80 = arith.constant 0 : index
    %c0_81 = arith.constant 0 : index
    %122 = vector.load %arg3[%c5, %c0_80, %c0_81] : memref<9x128x128xbf16, #tpu.memory_space<vmem>>, vector<1x128x128xbf16>
    %123 = vector.shape_cast %122 : vector<1x128x128xbf16> to vector<128x128xbf16>
    %cst_82 = arith.constant dense<0.000000e+00> : vector<80x128xf32>
    %124 = tpu.matmul %121, %123, %cst_82 {dimension_numbers = #tpu.dot_dimension_numbers<[1], [0], [0], [1], [0, 0, 1, 1], [], []>} : vector<80x128xbf16>, vector<128x128xbf16>, vector<80x128xf32> -> vector<80x128xf32>
    %125 = arith.addf %119, %124 : vector<80x128xf32>
    %c20_83 = arith.constant 20 : index
    %c0_84 = arith.constant 0 : index
    %126 = vector.load %arg10[%c20_83, %c0_84] : memref<104x128xf32, #tpu.memory_space<vmem>>, vector<80x128xf32>
    %127 = arith.truncf %126 : vector<80x128xf32> to vector<80x128xbf16>
    %c6 = arith.constant 6 : index
    %c0_85 = arith.constant 0 : index
    %c0_86 = arith.constant 0 : index
    %128 = vector.load %arg3[%c6, %c0_85, %c0_86] : memref<9x128x128xbf16, #tpu.memory_space<vmem>>, vector<1x128x128xbf16>
    %129 = vector.shape_cast %128 : vector<1x128x128xbf16> to vector<128x128xbf16>
    %cst_87 = arith.constant dense<0.000000e+00> : vector<80x128xf32>
    %130 = tpu.matmul %127, %129, %cst_87 {dimension_numbers = #tpu.dot_dimension_numbers<[1], [0], [0], [1], [0, 0, 1, 1], [], []>} : vector<80x128xbf16>, vector<128x128xbf16>, vector<80x128xf32> -> vector<80x128xf32>
    %131 = arith.addf %125, %130 : vector<80x128xf32>
    %c21_88 = arith.constant 21 : index
    %c0_89 = arith.constant 0 : index
    %132 = vector.load %arg10[%c21_88, %c0_89] : memref<104x128xf32, #tpu.memory_space<vmem>>, vector<80x128xf32>
    %133 = arith.truncf %132 : vector<80x128xf32> to vector<80x128xbf16>
    %c7 = arith.constant 7 : index
    %c0_90 = arith.constant 0 : index
    %c0_91 = arith.constant 0 : index
    %134 = vector.load %arg3[%c7, %c0_90, %c0_91] : memref<9x128x128xbf16, #tpu.memory_space<vmem>>, vector<1x128x128xbf16>
    %135 = vector.shape_cast %134 : vector<1x128x128xbf16> to vector<128x128xbf16>
    %cst_92 = arith.constant dense<0.000000e+00> : vector<80x128xf32>
    %136 = tpu.matmul %133, %135, %cst_92 {dimension_numbers = #tpu.dot_dimension_numbers<[1], [0], [0], [1], [0, 0, 1, 1], [], []>} : vector<80x128xbf16>, vector<128x128xbf16>, vector<80x128xf32> -> vector<80x128xf32>
    %137 = arith.addf %131, %136 : vector<80x128xf32>
    %c22_93 = arith.constant 22 : index
    %c0_94 = arith.constant 0 : index
    %138 = vector.load %arg10[%c22_93, %c0_94] : memref<104x128xf32, #tpu.memory_space<vmem>>, vector<80x128xf32>
    %139 = arith.truncf %138 : vector<80x128xf32> to vector<80x128xbf16>
    %c8 = arith.constant 8 : index
    %c0_95 = arith.constant 0 : index
    %c0_96 = arith.constant 0 : index
    %140 = vector.load %arg3[%c8, %c0_95, %c0_96] : memref<9x128x128xbf16, #tpu.memory_space<vmem>>, vector<1x128x128xbf16>
    %141 = vector.shape_cast %140 : vector<1x128x128xbf16> to vector<128x128xbf16>
    %cst_97 = arith.constant dense<0.000000e+00> : vector<80x128xf32>
    %142 = tpu.matmul %139, %141, %cst_97 {dimension_numbers = #tpu.dot_dimension_numbers<[1], [0], [0], [1], [0, 0, 1, 1], [], []>} : vector<80x128xbf16>, vector<128x128xbf16>, vector<80x128xf32> -> vector<80x128xf32>
    %143 = arith.addf %137, %142 : vector<80x128xf32>
    %c0_98 = arith.constant 0 : index
    %c0_99 = arith.constant 0 : index
    %144 = vector.load %arg6[%c0_98, %c0_99] : memref<1x128xf32, #tpu.memory_space<vmem>>, vector<1x128xf32>
    %145 = vector.broadcast %144 : vector<1x128xf32> to vector<80x128xf32>
    %146 = arith.mulf %143, %145 : vector<80x128xf32>
    %c0_100 = arith.constant 0 : index
    %c0_101 = arith.constant 0 : index
    %147 = vector.load %arg7[%c0_100, %c0_101] : memref<1x128xf32, #tpu.memory_space<vmem>>, vector<1x128xf32>
    %148 = vector.broadcast %147 : vector<1x128xf32> to vector<80x128xf32>
    %149 = arith.addf %146, %148 : vector<80x128xf32>
    %cst_102 = arith.constant 0.000000e+00 : f32
    %150 = vector.broadcast %cst_102 : f32 to vector<80x128xf32>
    %151 = arith.maximumf %149, %150 : vector<80x128xf32>
    %c0_103 = arith.constant 0 : index
    %c0_104 = arith.constant 0 : index
    %c0_105 = arith.constant 0 : index
    %152 = vector.load %arg8[%c0_103, %c0_104, %c0_105] : memref<1x80x128xf32, #tpu.memory_space<vmem>>, vector<1x80x128xf32>
    %153 = vector.shape_cast %152 : vector<1x80x128xf32> to vector<80x128xf32>
    %154 = vector.shape_cast %151 : vector<80x128xf32> to vector<1x80x128xf32>
    tpu.vector_store %arg8[%c0_103, %c0_104, %c0_105], %154 {strides = array<i32>} : memref<1x80x128xf32, #tpu.memory_space<vmem>>, vector<1x80x128xf32>,
    return
  }
  func.func @transform_0(%arg0: i32) -> (i32, i32, i32, i32, i32) {
    %c0_i32 = arith.constant 0 : i32
    %c0_i32_0 = arith.constant 0 : i32
    %c0_i32_1 = arith.constant 0 : i32
    %c0_i32_2 = arith.constant 0 : i32
    %c0_i32_3 = arith.constant 0 : i32
    return %arg0, %c0_i32, %c0_i32_0, %c0_i32_1, %c0_i32_2 : i32, i32, i32, i32, i32
  }
  func.func @transform_1(%arg0: i32) -> (i32, i32) {
    %c0_i32 = arith.constant 0 : i32
    %c0_i32_0 = arith.constant 0 : i32
    %c0_i32_1 = arith.constant 0 : i32
    return %c0_i32, %c0_i32_0 : i32, i32
  }
  func.func @transform_2(%arg0: i32) -> (i32, i32, i32) {
    %c0_i32 = arith.constant 0 : i32
    %c0_i32_0 = arith.constant 0 : i32
    %c0_i32_1 = arith.constant 0 : i32
    %c0_i32_2 = arith.constant 0 : i32
    return %c0_i32, %c0_i32_0, %c0_i32_1 : i32, i32, i32
  }
  func.func @transform_3(%arg0: i32) -> (i32, i32) {
    %c0_i32 = arith.constant 0 : i32
    %c0_i32_0 = arith.constant 0 : i32
    %c0_i32_1 = arith.constant 0 : i32
    return %c0_i32, %c0_i32_0 : i32, i32
  }
  func.func @transform_4(%arg0: i32) -> (i32, i32) {
    %c0_i32 = arith.constant 0 : i32
    %c0_i32_0 = arith.constant 0 : i32
    %c0_i32_1 = arith.constant 0 : i32
    return %c0_i32, %c0_i32_0 : i32, i32
  }
  func.func @transform_5(%arg0: i32) -> (i32, i32) {
    %c0_i32 = arith.constant 0 : i32
    %c0_i32_0 = arith.constant 0 : i32
    %c0_i32_1 = arith.constant 0 : i32
    return %c0_i32, %c0_i32_0 : i32, i32
  }
  func.func @transform_6(%arg0: i32) -> (i32, i32) {
    %c0_i32 = arith.constant 0 : i32
    %c0_i32_0 = arith.constant 0 : i32
    %c0_i32_1 = arith.constant 0 : i32
    return %c0_i32, %c0_i32_0 : i32, i32
  }
  func.func @transform_7(%arg0: i32) -> (i32, i32, i32) {
    %c0_i32 = arith.constant 0 : i32
    %c0_i32_0 = arith.constant 0 : i32
    %c0_i32_1 = arith.constant 0 : i32
    return %arg0, %c0_i32, %c0_i32_0 : i32, i32, i32
  }
}

</mosaic_0001>

<llo_original>
// kernel: tpu_custom_call.1
$region0: #{tpu_custom_call.1}
  #allocation0 [shape = 'u32[]', space=smem, size = 0x4, offset = 0x4, fixed_abs, tag = 'smem constant byte address 0x4 - core index']
  #allocation1 [shape = 'u32[72,128]{1,0:T(1,128)}', space=vmem, size = 0x9000, scoped, tag = 'internal scratch']
  #allocation2 [shape = 'f32[104,4]{1,0:T(8,128)}', space=vmem, size = 0xd000, scoped, tag = 'scratch operand']
  #allocation3 [shape = 'f32[104,128]{1,0:T(8,128)}', space=vmem, size = 0xd000, scoped, tag = 'scratch operand']
  %s0 = inlined_call_operand.hbm [shape: f32[2,8,2,8,8], index: 0, kind: input, shape index: {}]
  %s1 = inlined_call_operand.hbm [shape: bf16[36,128], index: 1, kind: input, shape index: {}]
  %s2 = inlined_call_operand.hbm [shape: bf16[9,128,128], index: 2, kind: input, shape index: {}]
  %s3 = inlined_call_operand.vmem [shape: f32[1,128], index: 3, kind: input, shape index: {}]
  %s4 = inlined_call_operand.vmem [shape: f32[1,128], index: 4, kind: input, shape index: {}]
  %s5 = inlined_call_operand.vmem [shape: f32[1,128], index: 5, kind: input, shape index: {}]
  %s6 = inlined_call_operand.vmem [shape: f32[1,128], index: 6, kind: input, shape index: {}]
  %s7 = inlined_call_operand.hbm [shape: f32[2,80,128], index: 7, kind: output, shape index: {}]
  %s8 = sld [smem:[#allocation0]]
  $region73: #{tpu_custom_call.1} parent=0
    _
  %s10 = ssub.s32 1, %s8
  %s11 = scalar_select 0, %s10, %s8
  $region1: #{tpu_custom_call.1} parent=0
    #allocation4 [shape = 'u8[131072]{0}', space=vmem, size = 0x20000, scoped, tag = 'input window, operand 0']
    #allocation5 [shape = 's32[2]{0}', space=sflag, size = 0x8, scoped, tag = 'scoped memory for tpu_custom_call.1']
    #allocation6 [shape = 's32[2]{0}', space=sflag, size = 0x8, scoped, tag = 'scoped memory for tpu_custom_call.1']
    #allocation7 [shape = 'u8[10240]{0}', space=vmem, size = 0x2800, scoped, tag = 'input window, operand 1, single buffered']
    #allocation8 [shape = 's32[1]{0}', space=sflag, size = 0x4, scoped, tag = 'scoped memory for tpu_custom_call.1']
    #allocation9 [shape = 'u8[294912]{0}', space=vmem, size = 0x48000, scoped, tag = 'input window, operand 2, single buffered']
    #allocation10 [shape = 'u8[81920]{0}', space=vmem, size = 0x14000, scoped, tag = 'output window, operand 0']
    %12 = vsyncpa [#allocation5], 0
    %s13 = scalar_lea.sflag [#allocation5], 1
    %14 = vsyncpa %s13, 0
    %15 = vsyncpa [#allocation8], 0
    %16 = vsyncpa [#allocation6], 0
    %s17 = scalar_lea.sflag [#allocation6], 1
    %18 = vsyncpa %s17, 0
    loop: start=0, step=1, limit=4
    $region2: #{tpu_custom_call.1} parent=1 // loop_pre_header
      _
    $region3: #{tpu_custom_call.1} parent=1 // loop_header
      %s20 = sphi 0, %s24
      %p21 = scmp.ge.s32.totalorder %s20, 4
      %s30 = sphi 0, %s32
      %s33 = sphi 0, %s30
      %s34 = sphi 0, %s33
      %s50 = sphi 0, %s34
      %s54 = sphi 0, %s54
      %s56 = sphi 0, %s54
      %s57 = sphi 0, %s56
      %s71 = sphi 0, %s57
      %s75 = sphi 0, %s75
      %s77 = sphi 0, %s75
      %s78 = sphi 0, %s77
      %s92 = sphi 0, %s78
      %s96 = sphi 0, %s96
      %s98 = sphi 0, %s96
      %s99 = sphi 0, %s98
      %s113 = sphi 0, %s99
      %s117 = sphi 0, %s117
      %s119 = sphi 0, %s117
      %s120 = sphi 0, %s119
      %s134 = sphi 0, %s120
      %s138 = sphi 0, %s138
      %s140 = sphi 0, %s138
      %s141 = sphi 0, %s140
      %s155 = sphi 0, %s141
      %s159 = sphi 0, %s159
      %s161 = sphi 0, %s159
      %s162 = sphi 0, %s161
      %s176 = sphi 0, %s162
      %s182 = sphi 0, %s184
      %s185 = sphi 0, %s182
      %s186 = sphi 0, %s185
      %s202 = sphi 0, %s186
    $region4: #{tpu_custom_call.1} parent=1 // loop_header_branch
      %23 = sbr.rel (%p21) target = $region8
    $region5: #{tpu_custom_call.1} parent=1 // loop_body
      %s25 = ssub.s32 %s20, 1
      %s26 = ssub.s32 %s20, 2
      %s27 = sadd.s32 %s20, 1
      %s28 = ssub.s32 %s20, %s27
      %p29 = scmp.eq.s32.totalorder %s28, 0
      %s31 = sadd.s32 %s30, 1
      %s32 = scalar_select %p29, %s30, %s31
      %p35 = pneg %p29
      %p36 = scmp.eq.s32.totalorder %s20, 1
      %p37 = por %p35, %p36
      %p38 = scmp.ne.s32.totalorder %s30, %s33
      %p39 = scmp.eq.s32.totalorder %s20, 0
      %p40 = por %p38, %p39
      %p41 = scmp.ne.s32.totalorder %s30, %s33
      %p42 = scmp.eq.s32.totalorder %s25, 1
      %p43 = por %p41, %p42
      %p44 = scmp.ne.s32.totalorder %s33, %s34
      %p45 = scmp.eq.s32.totalorder %s25, 0
      %p46 = por %p44, %p45
      %p47 = scmp.ne.s32.totalorder %s33, %s34
      %p48 = scmp.eq.s32.totalorder %s26, 1
      %p49 = por %p47, %p48
      %p51 = scmp.ne.s32.totalorder %s34, %s50
      %p52 = scmp.eq.s32.totalorder %s26, 0
      %p53 = por %p51, %p52
      %s55 = sadd.s32 %s54, 1
      %p58 = scmp.eq.s32.totalorder %s20, 1
      %p59 = scmp.ne.s32.totalorder %s54, %s56
      %p60 = scmp.eq.s32.totalorder %s20, 0
      %p61 = por %p59, %p60
      %p62 = scmp.ne.s32.totalorder %s54, %s56
      %p63 = scmp.eq.s32.totalorder %s25, 1
      %p64 = por %p62, %p63
      %p65 = scmp.ne.s32.totalorder %s56, %s57
      %p66 = scmp.eq.s32.totalorder %s25, 0
      %p67 = por %p65, %p66
      %p68 = scmp.ne.s32.totalorder %s56, %s57
      %p69 = scmp.eq.s32.totalorder %s26, 1
      %p70 = por %p68, %p69
      %p72 = scmp.ne.s32.totalorder %s57, %s71
      %p73 = scmp.eq.s32.totalorder %s26, 0
      %p74 = por %p72, %p73
      %s76 = sadd.s32 %s75, 1
      %p79 = scmp.eq.s32.totalorder %s20, 1
      %p80 = scmp.ne.s32.totalorder %s75, %s77
      %p81 = scmp.eq.s32.totalorder %s20, 0
      %p82 = por %p80, %p81
      %p83 = scmp.ne.s32.totalorder %s75, %s77
      %p84 = scmp.eq.s32.totalorder %s25, 1
      %p85 = por %p83, %p84
      %p86 = scmp.ne.s32.totalorder %s77, %s78
      %p87 = scmp.eq.s32.totalorder %s25, 0
      %p88 = por %p86, %p87
      %p89 = scmp.ne.s32.totalorder %s77, %s78
      %p90 = scmp.eq.s32.totalorder %s26, 1
      %p91 = por %p89, %p90
      %p93 = scmp.ne.s32.totalorder %s78, %s92
      %p94 = scmp.eq.s32.totalorder %s26, 0
      %p95 = por %p93, %p94
      %s97 = sadd.s32 %s96, 1
      %p100 = scmp.eq.s32.totalorder %s20, 1
      %p101 = scmp.ne.s32.totalorder %s96, %s98
      %p102 = scmp.eq.s32.totalorder %s20, 0
      %p103 = por %p101, %p102
      %p104 = scmp.ne.s32.totalorder %s96, %s98
      %p105 = scmp.eq.s32.totalorder %s25, 1
      %p106 = por %p104, %p105
      %p107 = scmp.ne.s32.totalorder %s98, %s99
      %p108 = scmp.eq.s32.totalorder %s25, 0
      %p109 = por %p107, %p108
      %p110 = scmp.ne.s32.totalorder %s98, %s99
      %p111 = scmp.eq.s32.totalorder %s26, 1
      %p112 = por %p110, %p111
      %p114 = scmp.ne.s32.totalorder %s99, %s113
      %p115 = scmp.eq.s32.totalorder %s26, 0
      %p116 = por %p114, %p115
      %s118 = sadd.s32 %s117, 1
      %p121 = scmp.eq.s32.totalorder %s20, 1
      %p122 = scmp.ne.s32.totalorder %s117, %s119
      %p123 = scmp.eq.s32.totalorder %s20, 0
      %p124 = por %p122, %p123
      %p125 = scmp.ne.s32.totalorder %s117, %s119
      %p126 = scmp.eq.s32.totalorder %s25, 1
      %p127 = por %p125, %p126
      %p128 = scmp.ne.s32.totalorder %s119, %s120
      %p129 = scmp.eq.s32.totalorder %s25, 0
      %p130 = por %p128, %p129
      %p131 = scmp.ne.s32.totalorder %s119, %s120
      %p132 = scmp.eq.s32.totalorder %s26, 1
      %p133 = por %p131, %p132
      %p135 = scmp.ne.s32.totalorder %s120, %s134
      %p136 = scmp.eq.s32.totalorder %s26, 0
      %p137 = por %p135, %p136
      %s139 = sadd.s32 %s138, 1
      %p142 = scmp.eq.s32.totalorder %s20, 1
      %p143 = scmp.ne.s32.totalorder %s138, %s140
      %p144 = scmp.eq.s32.totalorder %s20, 0
      %p145 = por %p143, %p144
      %p146 = scmp.ne.s32.totalorder %s138, %s140
      %p147 = scmp.eq.s32.totalorder %s25, 1
      %p148 = por %p146, %p147
      %p149 = scmp.ne.s32.totalorder %s140, %s141
      %p150 = scmp.eq.s32.totalorder %s25, 0
      %p151 = por %p149, %p150
      %p152 = scmp.ne.s32.totalorder %s140, %s141
      %p153 = scmp.eq.s32.totalorder %s26, 1
      %p154 = por %p152, %p153
      %p156 = scmp.ne.s32.totalorder %s141, %s155
      %p157 = scmp.eq.s32.totalorder %s26, 0
      %p158 = por %p156, %p157
      %s160 = sadd.s32 %s159, 1
      %p163 = scmp.eq.s32.totalorder %s20, 1
      %p164 = scmp.ne.s32.totalorder %s159, %s161
      %p165 = scmp.eq.s32.totalorder %s20, 0
      %p166 = por %p164, %p165
      %p167 = scmp.ne.s32.totalorder %s159, %s161
      %p168 = scmp.eq.s32.totalorder %s25, 1
      %p169 = por %p167, %p168
      %p170 = scmp.ne.s32.totalorder %s161, %s162
      %p171 = scmp.eq.s32.totalorder %s25, 0
      %p172 = por %p170, %p171
      %p173 = scmp.ne.s32.totalorder %s161, %s162
      %p174 = scmp.eq.s32.totalorder %s26, 1
      %p175 = por %p173, %p174
      %p177 = scmp.ne.s32.totalorder %s162, %s176
      %p178 = scmp.eq.s32.totalorder %s26, 0
      %p179 = por %p177, %p178
      %s180 = ssub.s32 %s20, %s27
      %p181 = scmp.eq.s32.totalorder %s180, 0
      %s183 = sadd.s32 %s182, 1
      %s184 = scalar_select %p181, %s182, %s183
      %p187 = pneg %p181
      %p188 = scmp.eq.s32.totalorder %s20, 1
      %p189 = por %p187, %p188
      %p190 = scmp.ne.s32.totalorder %s182, %s185
      %p191 = scmp.eq.s32.totalorder %s20, 0
      %p192 = por %p190, %p191
      %p193 = scmp.ne.s32.totalorder %s182, %s185
      %p194 = scmp.eq.s32.totalorder %s25, 1
      %p195 = por %p193, %p194
      %p196 = scmp.ne.s32.totalorder %s185, %s186
      %p197 = scmp.eq.s32.totalorder %s25, 0
      %p198 = por %p196, %p197
      %p199 = scmp.ne.s32.totalorder %s185, %s186
      %p200 = scmp.eq.s32.totalorder %s26, 1
      %p201 = por %p199, %p200
      %p203 = scmp.ne.s32.totalorder %s186, %s202
      %p204 = scmp.eq.s32.totalorder %s26, 0
      %p205 = por %p203, %p204
      %p206 = scmp.le.s32.totalorder 1, %s20
      %p207 = scmp.lt.s32.totalorder %s20, 3
      %p208 = pnand %p206, %p207
      %p209 = pneg %p208
      // Predicated region
      $region9: #{tpu_custom_call.1} parent=5 // pred_check
        _
      $region10: #{tpu_custom_call.1} parent=5 // pred_check_branch
        %211 = sbr.rel (%p208) target = $region12
      $region11: #{tpu_custom_call.1} parent=5 // pred_region
        %s212 = ssub.s32 %s20, 1
        // Predicated region
        $region13: #{tpu_custom_call.1} parent=11 // pred_check
          %p213 = pneg %p67
        $region14: #{tpu_custom_call.1} parent=11 // pred_check_branch
          %215 = sbr.rel (%p213) target = $region16
        $region15: #{tpu_custom_call.1} parent=11 // pred_region
          %217 = vsyncadd [#allocation8], 0
          %s218 = sshll.u32 %s1, 4
          %s219 = int_to_ptr.hbm [resolvable:$true] %s218
          %s220 = sshll.u32 [#allocation7], 4
          %s221 = int_to_ptr.vmem [resolvable:$true] %s220
          %226 = dma.hbm_to_vmem [thread:$0]  %s219, 320, %s221, [#allocation8], 64, 64, 4
        $region16: #{tpu_custom_call.1} parent=11 // pred_fallthru
          _
        // Predicated region
        $region17: #{tpu_custom_call.1} parent=11 // pred_check
          %p227 = pneg %p88
        $region18: #{tpu_custom_call.1} parent=11 // pred_check_branch
          %229 = sbr.rel (%p227) target = $region20
        $region19: #{tpu_custom_call.1} parent=11 // pred_region
          %231 = vsyncadd [#allocation8], 0
          %s232 = sshll.u32 %s2, 4
          %s233 = int_to_ptr.hbm [resolvable:$true] %s232
          %s234 = sshll.u32 [#allocation9], 4
          %s235 = int_to_ptr.vmem [resolvable:$true] %s234
          %240 = dma.hbm_to_vmem [thread:$0]  %s233, 9216, %s235, [#allocation8], 64, 64, 4
        $region20: #{tpu_custom_call.1} parent=11 // pred_fallthru
          _
        // Predicated region
        $region21: #{tpu_custom_call.1} parent=11 // pred_check
          %p241 = pneg %p109
        $region22: #{tpu_custom_call.1} parent=11 // pred_check_branch
          %243 = sbr.rel (%p241) target = $region24
        $region23: #{tpu_custom_call.1} parent=11 // pred_region
          _
        $region24: #{tpu_custom_call.1} parent=11 // pred_fallthru
          _
        // Predicated region
        $region25: #{tpu_custom_call.1} parent=11 // pred_check
          %p244 = pneg %p130
        $region26: #{tpu_custom_call.1} parent=11 // pred_check_branch
          %246 = sbr.rel (%p244) target = $region28
        $region27: #{tpu_custom_call.1} parent=11 // pred_region
          _
        $region28: #{tpu_custom_call.1} parent=11 // pred_fallthru
          _
        // Predicated region
        $region29: #{tpu_custom_call.1} parent=11 // pred_check
          %p247 = pneg %p151
        $region30: #{tpu_custom_call.1} parent=11 // pred_check_branch
          %249 = sbr.rel (%p247) target = $region32
        $region31: #{tpu_custom_call.1} parent=11 // pred_region
          _
        $region32: #{tpu_custom_call.1} parent=11 // pred_fallthru
          _
        // Predicated region
        $region33: #{tpu_custom_call.1} parent=11 // pred_check
          %p250 = pneg %p172
        $region34: #{tpu_custom_call.1} parent=11 // pred_check_branch
          %252 = sbr.rel (%p250) target = $region36
        $region35: #{tpu_custom_call.1} parent=11 // pred_region
          _
        $region36: #{tpu_custom_call.1} parent=11 // pred_fallthru
          _
      $region12: #{tpu_custom_call.1} parent=5 // pred_fallthru
        _
      %p253 = scmp.lt.s32.totalorder %s20, 2
      // Predicated region
      $region37: #{tpu_custom_call.1} parent=5 // pred_check
        %p254 = pneg %p253
      $region38: #{tpu_custom_call.1} parent=5 // pred_check_branch
        %256 = sbr.rel (%p254) target = $region40
      $region39: #{tpu_custom_call.1} parent=5 // pred_region
        // Predicated region
        $region41: #{tpu_custom_call.1} parent=39 // pred_check
          %p257 = pneg %p40
        $region42: #{tpu_custom_call.1} parent=39 // pred_check_branch
          %259 = sbr.rel (%p257) target = $region44
        $region43: #{tpu_custom_call.1} parent=39 // pred_region
          %s260 = sand.u32 %s30, 1
          %s261 = scalar_lea.sflag [#allocation5], %s260
          %s262 = sand.u32 %s30, 1
          %s263 = smul.addr %s262, 128
          %s264 = scalar_lea.vmem [#allocation4], %s263
          %266 = vsyncadd %s261, 0
          %s267 = smul.addr %s20, 16
          %s268 = smul.addr %s267, 8
          %s269 = scalar_lea.hbm %s0, %s268
          %s270 = sshll.u32 %s269, 4
          %s271 = int_to_ptr.hbm [resolvable:$true] %s270
          %s272 = sshll.u32 %s264, 4
          %s273 = int_to_ptr.vmem [resolvable:$true] %s272
          %278 = dma.hbm_to_vmem [thread:$0]  %s271, 2048, %s273, %s261, 128, 128, 8
        $region44: #{tpu_custom_call.1} parent=39 // pred_fallthru
          _
      $region40: #{tpu_custom_call.1} parent=5 // pred_fallthru
        _
      %p279 = scmp.le.s32.totalorder 1, %s20
      %p280 = scmp.lt.s32.totalorder %s20, 3
      %p281 = pnand %p279, %p280
      %p282 = pneg %p281
      // Predicated region
      $region45: #{tpu_custom_call.1} parent=5 // pred_check
        _
      $region46: #{tpu_custom_call.1} parent=5 // pred_check_branch
        %284 = sbr.rel (%p281) target = $region48
      $region47: #{tpu_custom_call.1} parent=5 // pred_region
        %s285 = ssub.s32 %s20, 1
        %s286 = sand.u32 %s33, 1
        %s287 = scalar_lea.sflag [#allocation5], %s286
        %s288 = sand.u32 %s33, 1
        %s289 = smul.addr %s288, 128
        %s290 = scalar_lea.vmem [#allocation4], %s289
        // Predicated region
        $region49: #{tpu_custom_call.1} parent=47 // pred_check
          %p291 = pneg %p46
        $region50: #{tpu_custom_call.1} parent=47 // pred_check_branch
          %293 = sbr.rel (%p291) target = $region52
        $region51: #{tpu_custom_call.1} parent=47 // pred_region
          %295 = dma.done %s287, 2048
        $region52: #{tpu_custom_call.1} parent=47 // pred_fallthru
          _
        // Predicated region
        $region53: #{tpu_custom_call.1} parent=47 // pred_check
          %p296 = pneg %p67
        $region54: #{tpu_custom_call.1} parent=47 // pred_check_branch
          %298 = sbr.rel (%p296) target = $region56
        $region55: #{tpu_custom_call.1} parent=47 // pred_region
          %300 = dma.done [#allocation8], 320
        $region56: #{tpu_custom_call.1} parent=47 // pred_fallthru
          _
        // Predicated region
        $region57: #{tpu_custom_call.1} parent=47 // pred_check
          %p301 = pneg %p88
        $region58: #{tpu_custom_call.1} parent=47 // pred_check_branch
          %303 = sbr.rel (%p301) target = $region60
        $region59: #{tpu_custom_call.1} parent=47 // pred_region
          %305 = dma.done [#allocation8], 9216
        $region60: #{tpu_custom_call.1} parent=47 // pred_fallthru
          _
        %s306 = sand.u32 %s33, 1
        %s307 = scalar_lea.sflag [#allocation5], %s306
        %s308 = sand.u32 %s33, 1
        %s309 = smul.addr %s308, 128
        %s310 = scalar_lea.vmem [#allocation4], %s309
        %p311 = pneg %p46
        %p312 = pneg %p43
        %p313 = pneg %p67
        %p314 = pneg %p64
        %p315 = pneg %p88
        %p316 = pneg %p85
        %p317 = pneg %p109
        %p318 = pneg %p106
        %p319 = pneg %p130
        %p320 = pneg %p127
        %p321 = pneg %p151
        %p322 = pneg %p148
        %p323 = pneg %p172
        %p324 = pneg %p169
        %p325 = pneg %p198
        %p326 = pneg %p195
        %s327 = sand.u32 %s185, 1
        %s328 = scalar_lea.sflag [#allocation6], %s327
        %s329 = sand.u32 %s185, 1
        %s330 = smul.addr %s329, 80
        %s331 = scalar_lea.vmem [#allocation10], %s330
        %v333 = vld [vmem:[%s290] sm:$0xff]
        %v334 = vld [vmem:[%s290 + $0x8] sm:$0xff]
        %v335 = vld [vmem:[%s290 + $0x10] sm:$0xff]
        %v336 = vld [vmem:[%s290 + $0x18] sm:$0xff]
        %v337 = vld [vmem:[%s290 + $0x20] sm:$0xff]
        %v338 = vld [vmem:[%s290 + $0x28] sm:$0xff]
        %v339 = vld [vmem:[%s290 + $0x30] sm:$0xff]
        %v340 = vld [vmem:[%s290 + $0x38] sm:$0xff]
        %v341 = vld [vmem:[%s290 + $0x40] sm:$0xff]
        %v342 = vld [vmem:[%s290 + $0x48] sm:$0xff]
        %v343 = vld [vmem:[%s290 + $0x50] sm:$0xff]
        %v344 = vld [vmem:[%s290 + $0x58] sm:$0xff]
        %v345 = vld [vmem:[%s290 + $0x60] sm:$0xff]
        %v346 = vld [vmem:[%s290 + $0x68] sm:$0xff]
        %v347 = vld [vmem:[%s290 + $0x70] sm:$0xff]
        %v348 = vld [vmem:[%s290 + $0x78] sm:$0xff]
        %v349 = vmax.f32 %v333, %v334
        %v350 = vmax.f32 %v335, %v336
        %v351 = vmax.f32 %v337, %v338
        %v352 = vmax.f32 %v339, %v340
        %v353 = vmax.f32 %v341, %v342
        %v354 = vmax.f32 %v343, %v344
        %v355 = vmax.f32 %v345, %v346
        %v356 = vmax.f32 %v347, %v348
        %365 = vrot.lane.b32.xlu0 %v349, 124
        %v366 = vpop.permute.xlu0 %365
        %367 = vrot.lane.b32.xlu0 %v350, 124
        %v368 = vpop.permute.xlu0 %367
        %369 = vrot.lane.b32.xlu0 %v351, 124
        %v370 = vpop.permute.xlu0 %369
        %371 = vrot.lane.b32.xlu0 %v352, 124
        %v372 = vpop.permute.xlu0 %371
        %373 = vrot.lane.b32.xlu0 %v353, 124
        %v374 = vpop.permute.xlu0 %373
        %375 = vrot.lane.b32.xlu0 %v354, 124
        %v376 = vpop.permute.xlu0 %375
        %377 = vrot.lane.b32.xlu0 %v355, 124
        %v378 = vpop.permute.xlu0 %377
        %379 = vrot.lane.b32.xlu0 %v356, 124
        %v380 = vpop.permute.xlu0 %379
        %v389 = vmax.f32 %v349, %v366
        %v390 = vmax.f32 %v350, %v368
        %v391 = vmax.f32 %v351, %v370
        %v392 = vmax.f32 %v352, %v372
        %v393 = vmax.f32 %v353, %v374
        %v394 = vmax.f32 %v354, %v376
        %v395 = vmax.f32 %v355, %v378
        %v396 = vmax.f32 %v356, %v380
        %vm397 = vcmask 31744
        %398 = vst.msk [vmem:[#allocation2] sm:$0xff] %vm397, 0.0
        %vm399 = vcmask 26624
        %400 = vst.msk [vmem:[#allocation2 + $0x8] sm:$0x7] %vm399, 0.0
        %401 = vst.msk [vmem:[#allocation2 + $0x5b] sm:$0xff] %vm397, 0.0
        %vm402 = vcmask 28672
        %403 = vst.msk [vmem:[#allocation2 + $0x63] sm:$0x1f] %vm402, 0.0
        %404 = vst.msk [vmem:[#allocation2 + $0xb] sm:$0xff] %vm397, %v389
        %vm405 = vcmask 25600
        %406 = vst.msk [vmem:[#allocation2 + $0x13] sm:$0x3] %vm405, 0.0
        %407 = vst.msk [vmem:[#allocation2 + $0x15] sm:$0xff] %vm397, %v390
        %408 = vst.msk [vmem:[#allocation2 + $0x1d] sm:$0x3] %vm405, 0.0
        %409 = vst.msk [vmem:[#allocation2 + $0x1f] sm:$0xff] %vm397, %v391
        %410 = vst.msk [vmem:[#allocation2 + $0x27] sm:$0x3] %vm405, 0.0
        %411 = vst.msk [vmem:[#allocation2 + $0x29] sm:$0xff] %vm397, %v392
        %412 = vst.msk [vmem:[#allocation2 + $0x31] sm:$0x3] %vm405, 0.0
        %413 = vst.msk [vmem:[#allocation2 + $0x33] sm:$0xff] %vm397, %v393
        %414 = vst.msk [vmem:[#allocation2 + $0x3b] sm:$0x3] %vm405, 0.0
        %415 = vst.msk [vmem:[#allocation2 + $0x3d] sm:$0xff] %vm397, %v394
        %416 = vst.msk [vmem:[#allocation2 + $0x45] sm:$0x3] %vm405, 0.0
        %417 = vst.msk [vmem:[#allocation2 + $0x47] sm:$0xff] %vm397, %v395
        %418 = vst.msk [vmem:[#allocation2 + $0x4f] sm:$0x3] %vm405, 0.0
        %419 = vst.msk [vmem:[#allocation2 + $0x51] sm:$0xff] %vm397, %v396
        %420 = vst.msk [vmem:[#allocation2 + $0x59] sm:$0x3] %vm405, 0.0
        %v421 = vld [vmem:[#allocation2] sm:$0xff]
        %v422 = vld [vmem:[#allocation2 + $0x8] sm:$0xff]
        %v423 = vld [vmem:[#allocation2 + $0x10] sm:$0xff]
        %v424 = vld [vmem:[#allocation2 + $0x18] sm:$0xff]
        %v425 = vld [vmem:[#allocation2 + $0x20] sm:$0xff]
        %v426 = vld [vmem:[#allocation2 + $0x28] sm:$0xff]
        %v427 = vld [vmem:[#allocation2 + $0x30] sm:$0xff]
        %v428 = vld [vmem:[#allocation2 + $0x38] sm:$0xff]
        %v429 = vld [vmem:[#allocation2 + $0x40] sm:$0xff]
        %v430 = vld [vmem:[#allocation2 + $0x48] sm:$0xff]
        %v431 = vld [vmem:[#allocation2 + $0x1] sm:$0xff]
        %v432 = vld [vmem:[#allocation2 + $0x9] sm:$0xff]
        %v433 = vld [vmem:[#allocation2 + $0x11] sm:$0xff]
        %v434 = vld [vmem:[#allocation2 + $0x19] sm:$0xff]
        %v435 = vld [vmem:[#allocation2 + $0x21] sm:$0xff]
        %v436 = vld [vmem:[#allocation2 + $0x29] sm:$0xff]
        %v437 = vld [vmem:[#allocation2 + $0x31] sm:$0xff]
        %v438 = vld [vmem:[#allocation2 + $0x39] sm:$0xff]
        %v439 = vld [vmem:[#allocation2 + $0x41] sm:$0xff]
        %v440 = vld [vmem:[#allocation2 + $0x49] sm:$0xff]
        %v441 = vld [vmem:[#allocation2 + $0x2] sm:$0xff]
        %v442 = vld [vmem:[#allocation2 + $0xa] sm:$0xff]
        %v443 = vld [vmem:[#allocation2 + $0x12] sm:$0xff]
        %v444 = vld [vmem:[#allocation2 + $0x1a] sm:$0xff]
        %v445 = vld [vmem:[#allocation2 + $0x22] sm:$0xff]
        %v446 = vld [vmem:[#allocation2 + $0x2a] sm:$0xff]
        %v447 = vld [vmem:[#allocation2 + $0x32] sm:$0xff]
        %v448 = vld [vmem:[#allocation2 + $0x3a] sm:$0xff]
        %v449 = vld [vmem:[#allocation2 + $0x42] sm:$0xff]
        %v450 = vld [vmem:[#allocation2 + $0x4a] sm:$0xff]
        %v451 = vld [vmem:[#allocation2 + $0x52] sm:$0xff]
        %v452 = vld [vmem:[#allocation2 + $0xb] sm:$0xff]
        %v453 = vld [vmem:[#allocation2 + $0x13] sm:$0xff]
        %v454 = vld [vmem:[#allocation2 + $0x1b] sm:$0xff]
        %v455 = vld [vmem:[#allocation2 + $0x23] sm:$0xff]
        %v456 = vld [vmem:[#allocation2 + $0x2b] sm:$0xff]
        %v457 = vld [vmem:[#allocation2 + $0x33] sm:$0xff]
        %v458 = vld [vmem:[#allocation2 + $0x3b] sm:$0xff]
        %v459 = vld [vmem:[#allocation2 + $0x43] sm:$0xff]
        %v460 = vld [vmem:[#allocation2 + $0x4b] sm:$0xff]
        %v461 = vld [vmem:[#allocation2 + $0x53] sm:$0xff]
        %v462 = vld [vmem:[#allocation2 + $0xc] sm:$0xff]
        %v463 = vld [vmem:[#allocation2 + $0x14] sm:$0xff]
        %v464 = vld [vmem:[#allocation2 + $0x1c] sm:$0xff]
        %v465 = vld [vmem:[#allocation2 + $0x24] sm:$0xff]
        %v466 = vld [vmem:[#allocation2 + $0x2c] sm:$0xff]
        %v467 = vld [vmem:[#allocation2 + $0x34] sm:$0xff]
        %v468 = vld [vmem:[#allocation2 + $0x3c] sm:$0xff]
        %v469 = vld [vmem:[#allocation2 + $0x44] sm:$0xff]
        %v470 = vld [vmem:[#allocation2 + $0x4c] sm:$0xff]
        %v471 = vld [vmem:[#allocation2 + $0x54] sm:$0xff]
        %v472 = vld [vmem:[#allocation2 + $0x5c] sm:$0xff]
        %v473 = vld [vmem:[#allocation2 + $0x15] sm:$0xff]
        %v474 = vld [vmem:[#allocation2 + $0x1d] sm:$0xff]
        %v475 = vld [vmem:[#allocation2 + $0x25] sm:$0xff]
        %v476 = vld [vmem:[#allocation2 + $0x2d] sm:$0xff]
        %v477 = vld [vmem:[#allocation2 + $0x35] sm:$0xff]
        %v478 = vld [vmem:[#allocation2 + $0x3d] sm:$0xff]
        %v479 = vld [vmem:[#allocation2 + $0x45] sm:$0xff]
        %v480 = vld [vmem:[#allocation2 + $0x4d] sm:$0xff]
        %v481 = vld [vmem:[#allocation2 + $0x55] sm:$0xff]
        %v482 = vld [vmem:[#allocation2 + $0x5d] sm:$0xff]
        %v483 = vld [vmem:[#allocation2 + $0x16] sm:$0xff]
        %v484 = vld [vmem:[#allocation2 + $0x1e] sm:$0xff]
        %v485 = vld [vmem:[#allocation2 + $0x26] sm:$0xff]
        %v486 = vld [vmem:[#allocation2 + $0x2e] sm:$0xff]
        %v487 = vld [vmem:[#allocation2 + $0x36] sm:$0xff]
        %v488 = vld [vmem:[#allocation2 + $0x3e] sm:$0xff]
        %v489 = vld [vmem:[#allocation2 + $0x46] sm:$0xff]
        %v490 = vld [vmem:[#allocation2 + $0x4e] sm:$0xff]
        %v491 = vld [vmem:[#allocation2 + $0x56] sm:$0xff]
        %v492 = vld [vmem:[#allocation2 + $0x5e] sm:$0xff]
        %503 = vrot.lane.b32.xlu0 %v431, 4
        %v504 = vpop.permute.xlu0 %503
        %505 = vrot.lane.b32.xlu0 %v432, 4
        %v506 = vpop.permute.xlu0 %505
        %507 = vrot.lane.b32.xlu0 %v433, 4
        %v508 = vpop.permute.xlu0 %507
        %509 = vrot.lane.b32.xlu0 %v434, 4
        %v510 = vpop.permute.xlu0 %509
        %511 = vrot.lane.b32.xlu0 %v435, 4
        %v512 = vpop.permute.xlu0 %511
        %513 = vrot.lane.b32.xlu0 %v436, 4
        %v514 = vpop.permute.xlu0 %513
        %515 = vrot.lane.b32.xlu0 %v437, 4
        %v516 = vpop.permute.xlu0 %515
        %517 = vrot.lane.b32.xlu0 %v438, 4
        %v518 = vpop.permute.xlu0 %517
        %519 = vrot.lane.b32.xlu0 %v439, 4
        %v520 = vpop.permute.xlu0 %519
        %521 = vrot.lane.b32.xlu0 %v440, 4
        %v522 = vpop.permute.xlu0 %521
        %543 = vrot.lane.b32.xlu0 %v441, 8
        %v544 = vpop.permute.xlu0 %543
        %545 = vrot.lane.b32.xlu0 %v442, 8
        %v546 = vpop.permute.xlu0 %545
        %547 = vrot.lane.b32.xlu0 %v443, 8
        %v548 = vpop.permute.xlu0 %547
        %549 = vrot.lane.b32.xlu0 %v444, 8
        %v550 = vpop.permute.xlu0 %549
        %551 = vrot.lane.b32.xlu0 %v445, 8
        %v552 = vpop.permute.xlu0 %551
        %553 = vrot.lane.b32.xlu0 %v446, 8
        %v554 = vpop.permute.xlu0 %553
        %555 = vrot.lane.b32.xlu0 %v447, 8
        %v556 = vpop.permute.xlu0 %555
        %557 = vrot.lane.b32.xlu0 %v448, 8
        %v558 = vpop.permute.xlu0 %557
        %559 = vrot.lane.b32.xlu0 %v449, 8
        %v560 = vpop.permute.xlu0 %559
        %561 = vrot.lane.b32.xlu0 %v450, 8
        %v562 = vpop.permute.xlu0 %561
        %574 = vrot.lane.b32.xlu0 %v442, 12
        %v575 = vpop.permute.xlu0 %574
        %576 = vrot.lane.b32.xlu0 %v443, 12
        %v577 = vpop.permute.xlu0 %576
        %578 = vrot.lane.b32.xlu0 %v444, 12
        %v579 = vpop.permute.xlu0 %578
        %580 = vrot.lane.b32.xlu0 %v445, 12
        %v581 = vpop.permute.xlu0 %580
        %582 = vrot.lane.b32.xlu0 %v446, 12
        %v583 = vpop.permute.xlu0 %582
        %584 = vrot.lane.b32.xlu0 %v447, 12
        %v585 = vpop.permute.xlu0 %584
        %586 = vrot.lane.b32.xlu0 %v448, 12
        %v587 = vpop.permute.xlu0 %586
        %588 = vrot.lane.b32.xlu0 %v449, 12
        %v589 = vpop.permute.xlu0 %588
        %590 = vrot.lane.b32.xlu0 %v450, 12
        %v591 = vpop.permute.xlu0 %590
        %592 = vrot.lane.b32.xlu0 %v451, 12
        %v593 = vpop.permute.xlu0 %592
        %614 = vrot.lane.b32.xlu0 %v452, 16
        %v615 = vpop.permute.xlu0 %614
        %616 = vrot.lane.b32.xlu0 %v453, 16
        %v617 = vpop.permute.xlu0 %616
        %618 = vrot.lane.b32.xlu0 %v454, 16
        %v619 = vpop.permute.xlu0 %618
        %620 = vrot.lane.b32.xlu0 %v455, 16
        %v621 = vpop.permute.xlu0 %620
        %622 = vrot.lane.b32.xlu0 %v456, 16
        %v623 = vpop.permute.xlu0 %622
        %624 = vrot.lane.b32.xlu0 %v457, 16
        %v625 = vpop.permute.xlu0 %624
        %626 = vrot.lane.b32.xlu0 %v458, 16
        %v627 = vpop.permute.xlu0 %626
        %628 = vrot.lane.b32.xlu0 %v459, 16
        %v629 = vpop.permute.xlu0 %628
        %630 = vrot.lane.b32.xlu0 %v460, 16
        %v631 = vpop.permute.xlu0 %630
        %632 = vrot.lane.b32.xlu0 %v461, 16
        %v633 = vpop.permute.xlu0 %632
        %654 = vrot.lane.b32.xlu0 %v462, 20
        %v655 = vpop.permute.xlu0 %654
        %656 = vrot.lane.b32.xlu0 %v463, 20
        %v657 = vpop.permute.xlu0 %656
        %658 = vrot.lane.b32.xlu0 %v464, 20
        %v659 = vpop.permute.xlu0 %658
        %660 = vrot.lane.b32.xlu0 %v465, 20
        %v661 = vpop.permute.xlu0 %660
        %662 = vrot.lane.b32.xlu0 %v466, 20
        %v663 = vpop.permute.xlu0 %662
        %664 = vrot.lane.b32.xlu0 %v467, 20
        %v665 = vpop.permute.xlu0 %664
        %666 = vrot.lane.b32.xlu0 %v468, 20
        %v667 = vpop.permute.xlu0 %666
        %668 = vrot.lane.b32.xlu0 %v469, 20
        %v669 = vpop.permute.xlu0 %668
        %670 = vrot.lane.b32.xlu0 %v470, 20
        %v671 = vpop.permute.xlu0 %670
        %672 = vrot.lane.b32.xlu0 %v471, 20
        %v673 = vpop.permute.xlu0 %672
        %685 = vrot.lane.b32.xlu0 %v463, 24
        %v686 = vpop.permute.xlu0 %685
        %687 = vrot.lane.b32.xlu0 %v464, 24
        %v688 = vpop.permute.xlu0 %687
        %689 = vrot.lane.b32.xlu0 %v465, 24
        %v690 = vpop.permute.xlu0 %689
        %691 = vrot.lane.b32.xlu0 %v466, 24
        %v692 = vpop.permute.xlu0 %691
        %693 = vrot.lane.b32.xlu0 %v467, 24
        %v694 = vpop.permute.xlu0 %693
        %695 = vrot.lane.b32.xlu0 %v468, 24
        %v696 = vpop.permute.xlu0 %695
        %697 = vrot.lane.b32.xlu0 %v469, 24
        %v698 = vpop.permute.xlu0 %697
        %699 = vrot.lane.b32.xlu0 %v470, 24
        %v700 = vpop.permute.xlu0 %699
        %701 = vrot.lane.b32.xlu0 %v471, 24
        %v702 = vpop.permute.xlu0 %701
        %703 = vrot.lane.b32.xlu0 %v472, 24
        %v704 = vpop.permute.xlu0 %703
        %725 = vrot.lane.b32.xlu0 %v473, 28
        %v726 = vpop.permute.xlu0 %725
        %727 = vrot.lane.b32.xlu0 %v474, 28
        %v728 = vpop.permute.xlu0 %727
        %729 = vrot.lane.b32.xlu0 %v475, 28
        %v730 = vpop.permute.xlu0 %729
        %731 = vrot.lane.b32.xlu0 %v476, 28
        %v732 = vpop.permute.xlu0 %731
        %733 = vrot.lane.b32.xlu0 %v477, 28
        %v734 = vpop.permute.xlu0 %733
        %735 = vrot.lane.b32.xlu0 %v478, 28
        %v736 = vpop.permute.xlu0 %735
        %737 = vrot.lane.b32.xlu0 %v479, 28
        %v738 = vpop.permute.xlu0 %737
        %739 = vrot.lane.b32.xlu0 %v480, 28
        %v740 = vpop.permute.xlu0 %739
        %741 = vrot.lane.b32.xlu0 %v481, 28
        %v742 = vpop.permute.xlu0 %741
        %743 = vrot.lane.b32.xlu0 %v482, 28
        %v744 = vpop.permute.xlu0 %743
        %765 = vrot.lane.b32.xlu0 %v483, 32
        %v766 = vpop.permute.xlu0 %765
        %767 = vrot.lane.b32.xlu0 %v484, 32
        %v768 = vpop.permute.xlu0 %767
        %769 = vrot.lane.b32.xlu0 %v485, 32
        %v770 = vpop.permute.xlu0 %769
        %771 = vrot.lane.b32.xlu0 %v486, 32
        %v772 = vpop.permute.xlu0 %771
        %773 = vrot.lane.b32.xlu0 %v487, 32
        %v774 = vpop.permute.xlu0 %773
        %775 = vrot.lane.b32.xlu0 %v488, 32
        %v776 = vpop.permute.xlu0 %775
        %777 = vrot.lane.b32.xlu0 %v489, 32
        %v778 = vpop.permute.xlu0 %777
        %779 = vrot.lane.b32.xlu0 %v490, 32
        %v780 = vpop.permute.xlu0 %779
        %781 = vrot.lane.b32.xlu0 %v491, 32
        %v782 = vpop.permute.xlu0 %781
        %783 = vrot.lane.b32.xlu0 %v492, 32
        %v784 = vpop.permute.xlu0 %783
        %v795 = vsel %vm397, %v421, %v504
        %v796 = vsel %vm397, %v422, %v506
        %v797 = vsel %vm397, %v423, %v508
        %v798 = vsel %vm397, %v424, %v510
        %v799 = vsel %vm397, %v425, %v512
        %v800 = vsel %vm397, %v426, %v514
        %v801 = vsel %vm397, %v427, %v516
        %v802 = vsel %vm397, %v428, %v518
        %v803 = vsel %vm397, %v429, %v520
        %v804 = vsel %vm397, %v430, %v522
        %vm805 = vcmask 64512
        %v806 = vsel %vm805, %v795, %v544
        %v807 = vsel %vm805, %v796, %v546
        %v808 = vsel %vm805, %v797, %v548
        %v809 = vsel %vm805, %v798, %v550
        %v810 = vsel %vm805, %v799, %v552
        %v811 = vsel %vm805, %v800, %v554
        %v812 = vsel %vm805, %v801, %v556
        %v813 = vsel %vm805, %v802, %v558
        %v814 = vsel %vm805, %v803, %v560
        %v815 = vsel %vm805, %v804, %v562
        %vm816 = vcmask 97280
        %v817 = vsel %vm816, %v806, %v575
        %v818 = vsel %vm816, %v807, %v577
        %v819 = vsel %vm816, %v808, %v579
        %v820 = vsel %vm816, %v809, %v581
        %v821 = vsel %vm816, %v810, %v583
        %v822 = vsel %vm816, %v811, %v585
        %v823 = vsel %vm816, %v812, %v587
        %v824 = vsel %vm816, %v813, %v589
        %v825 = vsel %vm816, %v814, %v591
        %v826 = vsel %vm816, %v815, %v593
        %vm827 = vcmask 130048
        %v828 = vsel %vm827, %v817, %v615
        %v829 = vsel %vm827, %v818, %v617
        %v830 = vsel %vm827, %v819, %v619
        %v831 = vsel %vm827, %v820, %v621
        %v832 = vsel %vm827, %v821, %v623
        %v833 = vsel %vm827, %v822, %v625
        %v834 = vsel %vm827, %v823, %v627
        %v835 = vsel %vm827, %v824, %v629
        %v836 = vsel %vm827, %v825, %v631
        %v837 = vsel %vm827, %v826, %v633
        %vm838 = vcmask 162816
        %v839 = vsel %vm838, %v828, %v655
        %v840 = vsel %vm838, %v829, %v657
        %v841 = vsel %vm838, %v830, %v659
        %v842 = vsel %vm838, %v831, %v661
        %v843 = vsel %vm838, %v832, %v663
        %v844 = vsel %vm838, %v833, %v665
        %v845 = vsel %vm838, %v834, %v667
        %v846 = vsel %vm838, %v835, %v669
        %v847 = vsel %vm838, %v836, %v671
        %v848 = vsel %vm838, %v837, %v673
        %vm849 = vcmask 195584
        %v850 = vsel %vm849, %v839, %v686
        %v851 = vsel %vm849, %v840, %v688
        %v852 = vsel %vm849, %v841, %v690
        %v853 = vsel %vm849, %v842, %v692
        %v854 = vsel %vm849, %v843, %v694
        %v855 = vsel %vm849, %v844, %v696
        %v856 = vsel %vm849, %v845, %v698
        %v857 = vsel %vm849, %v846, %v700
        %v858 = vsel %vm849, %v847, %v702
        %v859 = vsel %vm849, %v848, %v704
        %vm860 = vcmask 228352
        %v861 = vsel %vm860, %v850, %v726
        %v862 = vsel %vm860, %v851, %v728
        %v863 = vsel %vm860, %v852, %v730
        %v864 = vsel %vm860, %v853, %v732
        %v865 = vsel %vm860, %v854, %v734
        %v866 = vsel %vm860, %v855, %v736
        %v867 = vsel %vm860, %v856, %v738
        %v868 = vsel %vm860, %v857, %v740
        %v869 = vsel %vm860, %v858, %v742
        %v870 = vsel %vm860, %v859, %v744
        %vm871 = vcmask 261120
        %v872 = vsel %vm871, %v861, %v766
        %v873 = vsel %vm871, %v862, %v768
        %v874 = vsel %vm871, %v863, %v770
        %v875 = vsel %vm871, %v864, %v772
        %v876 = vsel %vm871, %v865, %v774
        %v877 = vsel %vm871, %v866, %v776
        %v878 = vsel %vm871, %v867, %v778
        %v879 = vsel %vm871, %v868, %v780
        %v880 = vsel %vm871, %v869, %v782
        %v881 = vsel %vm871, %v870, %v784
        %v882 = vpack.c.bf16 %v873, %v872
        %v883 = vpack.c.bf16 %v875, %v874
        %v884 = vpack.c.bf16 %v877, %v876
        %v885 = vpack.c.bf16 %v879, %v878
        %v886 = vpack.c.bf16 %v881, %v880
        %v887 = vld [vmem:[#allocation7] sm:$0xf]
        %v888 = vld [vmem:[#allocation7 + $0x4] sm:$0xf]
        %v889 = vld [vmem:[#allocation7 + $0x8] sm:$0xf]
        %v890 = vld [vmem:[#allocation7 + $0xc] sm:$0xf]
        %v891 = vld [vmem:[#allocation7 + $0x10] sm:$0x3]
        %v897 = vunpack.c.l.b16 %v887
        %v898 = vunpack.c.l.b16 %v888
        %v899 = vunpack.c.l.b16 %v889
        %v900 = vunpack.c.l.b16 %v890
        %v901 = vunpack.c.l.b16 %v891
        %v902 = vpack.c.b16 %v898, %v897
        %v903 = vpack.c.b16 %v900, %v899
        %v904 = vpack.c.b16 %v901, %v901
        %vm907 = vcmask 293888
        %v909 = vsel %vm907, %v882, 0
        %v912 = vsel %vm907, %v883, 0
        %v915 = vsel %vm907, %v884, 0
        %v918 = vsel %vm907, %v885, 0
        %v921 = vsel %vm907, %v886, 0
        %vm923 = vcmask 1041408
        %v925 = vsel %vm923, %v904, 0
        %927 = vmatpush.bf16.msra.mxu0 0
        %928 = vmatpush.bf16.msra.mxu0 0
        %929 = vmatpush.bf16.msra.mxu0 0
        %930 = vmatpush.bf16.msra.mxu0 0
        %931 = vmatpush.bf16.msra.mxu0 0
        %932 = vmatpush.bf16.msra.mxu0 %v925
        %933 = vmatpush.bf16.msra.mxu0 %v903
        %934 = vmatpush.bf16.msra.mxu0 %v902
        %935 = vmatmul.bf16.gmra.mxu0 %v909
        %v936 = vpop.f32.mrf.mxu0
        %v937 = vadd.f32 0.0, %v936
        %v938 = vpop.f32.mrf.mxu0
        %v939 = vadd.f32 0.0, %v938
        %940 = vmatmul.bf16.gmra.mxu0 %v912
        %v941 = vpop.f32.mrf.mxu0
        %v942 = vadd.f32 0.0, %v941
        %v943 = vpop.f32.mrf.mxu0
        %v944 = vadd.f32 0.0, %v943
        %945 = vmatmul.bf16.gmra.mxu0 %v915
        %v946 = vpop.f32.mrf.mxu0
        %v947 = vadd.f32 0.0, %v946
        %v948 = vpop.f32.mrf.mxu0
        %v949 = vadd.f32 0.0, %v948
        %950 = vmatmul.bf16.gmra.mxu0 %v918
        %v951 = vpop.f32.mrf.mxu0
        %v952 = vadd.f32 0.0, %v951
        %v953 = vpop.f32.mrf.mxu0
        %v954 = vadd.f32 0.0, %v953
        %955 = vmatmul.bf16.gmra.mxu0 %v921
        %v956 = vpop.f32.mrf.mxu0
        %v957 = vadd.f32 0.0, %v956
        %v958 = vpop.f32.mrf.mxu0
        %v959 = vadd.f32 0.0, %v958
        %960 = vdwg.mxu0
        %v961 = vld [vmem:[%s3] sm:$0x1]
        %v963 = vperm.slane %v961, 0
        %v965 = vmul.f32 %v937, %v963
        %v966 = vmul.f32 %v939, %v963
        %v967 = vmul.f32 %v942, %v963
        %v968 = vmul.f32 %v944, %v963
        %v969 = vmul.f32 %v947, %v963
        %v970 = vmul.f32 %v949, %v963
        %v971 = vmul.f32 %v952, %v963
        %v972 = vmul.f32 %v954, %v963
        %v973 = vmul.f32 %v957, %v963
        %v974 = vmul.f32 %v959, %v963
        %v975 = vld [vmem:[%s4] sm:$0x1]
        %v977 = vperm.slane %v975, 0
        %v979 = vadd.f32 %v965, %v977
        %v980 = vadd.f32 %v966, %v977
        %v981 = vadd.f32 %v967, %v977
        %v982 = vadd.f32 %v968, %v977
        %v983 = vadd.f32 %v969, %v977
        %v984 = vadd.f32 %v970, %v977
        %v985 = vadd.f32 %v971, %v977
        %v986 = vadd.f32 %v972, %v977
        %v987 = vadd.f32 %v973, %v977
        %v988 = vadd.f32 %v974, %v977
        %v989 = vmax.f32 %v979, 0.0
        %v990 = vmax.f32 %v980, 0.0
        %v991 = vmax.f32 %v981, 0.0
        %v992 = vmax.f32 %v982, 0.0
        %v993 = vmax.f32 %v983, 0.0
        %v994 = vmax.f32 %v984, 0.0
        %v995 = vmax.f32 %v985, 0.0
        %v996 = vmax.f32 %v986, 0.0
        %v997 = vmax.f32 %v987, 0.0
        %v998 = vmax.f32 %v988, 0.0
        %v999 = vlaneseq
        %v1000 = vshrl.u32 %v999, 7
        %v1001 = vadd.s32 %v1000, 8
        %v1002 = vadd.s32 %v1000, 16
        %v1003 = vadd.s32 %v1000, 24
        %v1004 = vadd.s32 %v1000, 32
        %v1005 = vadd.s32 %v1000, 40
        %v1006 = vadd.s32 %v1000, 48
        %v1007 = vadd.s32 %v1000, 56
        %v1008 = vadd.s32 %v1000, 64
        %v1009 = vadd.s32 %v1000, 72
        %vm1010 = vcmp.lt.s32.totalorder %v1000, 0
        %v1011 = vsub.s32 0, %v1000
        %v1012 = vsel %vm1010, %v1011, %v1000
        %v1013 = vand.u32 %v1012, 65535
        %v1014 = vshrl.u32 %v1012, 16
        %v1016 = vmul.u32 %v1013, 52429
        %v1017 = vmul.u32 %v1013, 52428
        %v1018 = vmul.u32 %v1014, 52429
        %v1019 = vmul.u32 %v1014, 52428
        %v1020 = vshll.u32 %v1017, 16
        %v1021 = vshrl.u32 %v1017, 16
        %v1022 = vshll.u32 %v1018, 16
        %v1023 = vshrl.u32 %v1018, 16
        %vm1024 = vc.u32 %v1016, %v1020
        %v1025 = vsel %vm1024, 1, 0
        %v1026 = vadd.s32 %v1016, %v1020
        %v1027 = vadd.s32 %v1019, %v1025
        %vm1028 = vc.u32 %v1026, %v1022
        %v1029 = vsel %vm1028, 1, 0
        %v1030 = vadd.s32 %v1026, %v1022
        %v1031 = vadd.s32 %v1027, %v1029
        %v1032 = vadd.s32 %v1031, %v1021
        %v1033 = vadd.s32 %v1032, %v1023
        %v1034 = vshrl.u32 %v1033, 3
        %v1035 = vmul.u32 %v1034, 10
        %v1036 = vsub.s32 %v1012, %v1035
        %v1037 = vsub.s32 0, %v1036
        %v1038 = vsel %vm1010, %v1037, %v1036
        %vm1039 = vcmp.lt.s32.totalorder %v1001, 0
        %v1040 = vsub.s32 0, %v1001
        %v1041 = vsel %vm1039, %v1040, %v1001
        %v1042 = vand.u32 %v1041, 65535
        %v1043 = vshrl.u32 %v1041, 16
        %v1045 = vmul.u32 %v1042, 52429
        %v1046 = vmul.u32 %v1042, 52428
        %v1047 = vmul.u32 %v1043, 52429
        %v1048 = vmul.u32 %v1043, 52428
        %v1049 = vshll.u32 %v1046, 16
        %v1050 = vshrl.u32 %v1046, 16
        %v1051 = vshll.u32 %v1047, 16
        %v1052 = vshrl.u32 %v1047, 16
        %vm1053 = vc.u32 %v1045, %v1049
        %v1054 = vsel %vm1053, 1, 0
        %v1055 = vadd.s32 %v1045, %v1049
        %v1056 = vadd.s32 %v1048, %v1054
        %vm1057 = vc.u32 %v1055, %v1051
        %v1058 = vsel %vm1057, 1, 0
        %v1059 = vadd.s32 %v1055, %v1051
        %v1060 = vadd.s32 %v1056, %v1058
        %v1061 = vadd.s32 %v1060, %v1050
        %v1062 = vadd.s32 %v1061, %v1052
        %v1063 = vshrl.u32 %v1062, 3
        %v1064 = vmul.u32 %v1063, 10
        %v1065 = vsub.s32 %v1041, %v1064
        %v1066 = vsub.s32 0, %v1065
        %v1067 = vsel %vm1039, %v1066, %v1065
        %vm1068 = vcmp.lt.s32.totalorder %v1002, 0
        %v1069 = vsub.s32 0, %v1002
        %v1070 = vsel %vm1068, %v1069, %v1002
        %v1071 = vand.u32 %v1070, 65535
        %v1072 = vshrl.u32 %v1070, 16
        %v1074 = vmul.u32 %v1071, 52429
        %v1075 = vmul.u32 %v1071, 52428
        %v1076 = vmul.u32 %v1072, 52429
        %v1077 = vmul.u32 %v1072, 52428
        %v1078 = vshll.u32 %v1075, 16
        %v1079 = vshrl.u32 %v1075, 16
        %v1080 = vshll.u32 %v1076, 16
        %v1081 = vshrl.u32 %v1076, 16
        %vm1082 = vc.u32 %v1074, %v1078
        %v1083 = vsel %vm1082, 1, 0
        %v1084 = vadd.s32 %v1074, %v1078
        %v1085 = vadd.s32 %v1077, %v1083
        %vm1086 = vc.u32 %v1084, %v1080
        %v1087 = vsel %vm1086, 1, 0
        %v1088 = vadd.s32 %v1084, %v1080
        %v1089 = vadd.s32 %v1085, %v1087
        %v1090 = vadd.s32 %v1089, %v1079
        %v1091 = vadd.s32 %v1090, %v1081
        %v1092 = vshrl.u32 %v1091, 3
        %v1093 = vmul.u32 %v1092, 10
        %v1094 = vsub.s32 %v1070, %v1093
        %v1095 = vsub.s32 0, %v1094
        %v1096 = vsel %vm1068, %v1095, %v1094
        %vm1097 = vcmp.lt.s32.totalorder %v1003, 0
        %v1098 = vsub.s32 0, %v1003
        %v1099 = vsel %vm1097, %v1098, %v1003
        %v1100 = vand.u32 %v1099, 65535
        %v1101 = vshrl.u32 %v1099, 16
        %v1103 = vmul.u32 %v1100, 52429
        %v1104 = vmul.u32 %v1100, 52428
        %v1105 = vmul.u32 %v1101, 52429
        %v1106 = vmul.u32 %v1101, 52428
        %v1107 = vshll.u32 %v1104, 16
        %v1108 = vshrl.u32 %v1104, 16
        %v1109 = vshll.u32 %v1105, 16
        %v1110 = vshrl.u32 %v1105, 16
        %vm1111 = vc.u32 %v1103, %v1107
        %v1112 = vsel %vm1111, 1, 0
        %v1113 = vadd.s32 %v1103, %v1107
        %v1114 = vadd.s32 %v1106, %v1112
        %vm1115 = vc.u32 %v1113, %v1109
        %v1116 = vsel %vm1115, 1, 0
        %v1117 = vadd.s32 %v1113, %v1109
        %v1118 = vadd.s32 %v1114, %v1116
        %v1119 = vadd.s32 %v1118, %v1108
        %v1120 = vadd.s32 %v1119, %v1110
        %v1121 = vshrl.u32 %v1120, 3
        %v1122 = vmul.u32 %v1121, 10
        %v1123 = vsub.s32 %v1099, %v1122
        %v1124 = vsub.s32 0, %v1123
        %v1125 = vsel %vm1097, %v1124, %v1123
        %vm1126 = vcmp.lt.s32.totalorder %v1004, 0
        %v1127 = vsub.s32 0, %v1004
        %v1128 = vsel %vm1126, %v1127, %v1004
        %v1129 = vand.u32 %v1128, 65535
        %v1130 = vshrl.u32 %v1128, 16
        %v1132 = vmul.u32 %v1129, 52429
        %v1133 = vmul.u32 %v1129, 52428
        %v1134 = vmul.u32 %v1130, 52429
        %v1135 = vmul.u32 %v1130, 52428
        %v1136 = vshll.u32 %v1133, 16
        %v1137 = vshrl.u32 %v1133, 16
        %v1138 = vshll.u32 %v1134, 16
        %v1139 = vshrl.u32 %v1134, 16
        %vm1140 = vc.u32 %v1132, %v1136
        %v1141 = vsel %vm1140, 1, 0
        %v1142 = vadd.s32 %v1132, %v1136
        %v1143 = vadd.s32 %v1135, %v1141
        %vm1144 = vc.u32 %v1142, %v1138
        %v1145 = vsel %vm1144, 1, 0
        %v1146 = vadd.s32 %v1142, %v1138
        %v1147 = vadd.s32 %v1143, %v1145
        %v1148 = vadd.s32 %v1147, %v1137
        %v1149 = vadd.s32 %v1148, %v1139
        %v1150 = vshrl.u32 %v1149, 3
        %v1151 = vmul.u32 %v1150, 10
        %v1152 = vsub.s32 %v1128, %v1151
        %v1153 = vsub.s32 0, %v1152
        %v1154 = vsel %vm1126, %v1153, %v1152
        %vm1155 = vcmp.lt.s32.totalorder %v1005, 0
        %v1156 = vsub.s32 0, %v1005
        %v1157 = vsel %vm1155, %v1156, %v1005
        %v1158 = vand.u32 %v1157, 65535
        %v1159 = vshrl.u32 %v1157, 16
        %v1161 = vmul.u32 %v1158, 52429
        %v1162 = vmul.u32 %v1158, 52428
        %v1163 = vmul.u32 %v1159, 52429
        %v1164 = vmul.u32 %v1159, 52428
        %v1165 = vshll.u32 %v1162, 16
        %v1166 = vshrl.u32 %v1162, 16
        %v1167 = vshll.u32 %v1163, 16
        %v1168 = vshrl.u32 %v1163, 16
        %vm1169 = vc.u32 %v1161, %v1165
        %v1170 = vsel %vm1169, 1, 0
        %v1171 = vadd.s32 %v1161, %v1165
        %v1172 = vadd.s32 %v1164, %v1170
        %vm1173 = vc.u32 %v1171, %v1167
        %v1174 = vsel %vm1173, 1, 0
        %v1175 = vadd.s32 %v1171, %v1167
        %v1176 = vadd.s32 %v1172, %v1174
        %v1177 = vadd.s32 %v1176, %v1166
        %v1178 = vadd.s32 %v1177, %v1168
        %v1179 = vshrl.u32 %v1178, 3
        %v1180 = vmul.u32 %v1179, 10
        %v1181 = vsub.s32 %v1157, %v1180
        %v1182 = vsub.s32 0, %v1181
        %v1183 = vsel %vm1155, %v1182, %v1181
        %vm1184 = vcmp.lt.s32.totalorder %v1006, 0
        %v1185 = vsub.s32 0, %v1006
        %v1186 = vsel %vm1184, %v1185, %v1006
        %v1187 = vand.u32 %v1186, 65535
        %v1188 = vshrl.u32 %v1186, 16
        %v1190 = vmul.u32 %v1187, 52429
        %v1191 = vmul.u32 %v1187, 52428
        %v1192 = vmul.u32 %v1188, 52429
        %v1193 = vmul.u32 %v1188, 52428
        %v1194 = vshll.u32 %v1191, 16
        %v1195 = vshrl.u32 %v1191, 16
        %v1196 = vshll.u32 %v1192, 16
        %v1197 = vshrl.u32 %v1192, 16
        %vm1198 = vc.u32 %v1190, %v1194
        %v1199 = vsel %vm1198, 1, 0
        %v1200 = vadd.s32 %v1190, %v1194
        %v1201 = vadd.s32 %v1193, %v1199
        %vm1202 = vc.u32 %v1200, %v1196
        %v1203 = vsel %vm1202, 1, 0
        %v1204 = vadd.s32 %v1200, %v1196
        %v1205 = vadd.s32 %v1201, %v1203
        %v1206 = vadd.s32 %v1205, %v1195
        %v1207 = vadd.s32 %v1206, %v1197
        %v1208 = vshrl.u32 %v1207, 3
        %v1209 = vmul.u32 %v1208, 10
        %v1210 = vsub.s32 %v1186, %v1209
        %v1211 = vsub.s32 0, %v1210
        %v1212 = vsel %vm1184, %v1211, %v1210
        %vm1213 = vcmp.lt.s32.totalorder %v1007, 0
        %v1214 = vsub.s32 0, %v1007
        %v1215 = vsel %vm1213, %v1214, %v1007
        %v1216 = vand.u32 %v1215, 65535
        %v1217 = vshrl.u32 %v1215, 16
        %v1219 = vmul.u32 %v1216, 52429
        %v1220 = vmul.u32 %v1216, 52428
        %v1221 = vmul.u32 %v1217, 52429
        %v1222 = vmul.u32 %v1217, 52428
        %v1223 = vshll.u32 %v1220, 16
        %v1224 = vshrl.u32 %v1220, 16
        %v1225 = vshll.u32 %v1221, 16
        %v1226 = vshrl.u32 %v1221, 16
        %vm1227 = vc.u32 %v1219, %v1223
        %v1228 = vsel %vm1227, 1, 0
        %v1229 = vadd.s32 %v1219, %v1223
        %v1230 = vadd.s32 %v1222, %v1228
        %vm1231 = vc.u32 %v1229, %v1225
        %v1232 = vsel %vm1231, 1, 0
        %v1233 = vadd.s32 %v1229, %v1225
        %v1234 = vadd.s32 %v1230, %v1232
        %v1235 = vadd.s32 %v1234, %v1224
        %v1236 = vadd.s32 %v1235, %v1226
        %v1237 = vshrl.u32 %v1236, 3
        %v1238 = vmul.u32 %v1237, 10
        %v1239 = vsub.s32 %v1215, %v1238
        %v1240 = vsub.s32 0, %v1239
        %v1241 = vsel %vm1213, %v1240, %v1239
        %vm1242 = vcmp.lt.s32.totalorder %v1008, 0
        %v1243 = vsub.s32 0, %v1008
        %v1244 = vsel %vm1242, %v1243, %v1008
        %v1245 = vand.u32 %v1244, 65535
        %v1246 = vshrl.u32 %v1244, 16
        %v1248 = vmul.u32 %v1245, 52429
        %v1249 = vmul.u32 %v1245, 52428
        %v1250 = vmul.u32 %v1246, 52429
        %v1251 = vmul.u32 %v1246, 52428
        %v1252 = vshll.u32 %v1249, 16
        %v1253 = vshrl.u32 %v1249, 16
        %v1254 = vshll.u32 %v1250, 16
        %v1255 = vshrl.u32 %v1250, 16
        %vm1256 = vc.u32 %v1248, %v1252
        %v1257 = vsel %vm1256, 1, 0
        %v1258 = vadd.s32 %v1248, %v1252
        %v1259 = vadd.s32 %v1251, %v1257
        %vm1260 = vc.u32 %v1258, %v1254
        %v1261 = vsel %vm1260, 1, 0
        %v1262 = vadd.s32 %v1258, %v1254
        %v1263 = vadd.s32 %v1259, %v1261
        %v1264 = vadd.s32 %v1263, %v1253
        %v1265 = vadd.s32 %v1264, %v1255
        %v1266 = vshrl.u32 %v1265, 3
        %v1267 = vmul.u32 %v1266, 10
        %v1268 = vsub.s32 %v1244, %v1267
        %v1269 = vsub.s32 0, %v1268
        %v1270 = vsel %vm1242, %v1269, %v1268
        %vm1271 = vcmp.lt.s32.totalorder %v1009, 0
        %v1272 = vsub.s32 0, %v1009
        %v1273 = vsel %vm1271, %v1272, %v1009
        %v1274 = vand.u32 %v1273, 65535
        %v1275 = vshrl.u32 %v1273, 16
        %v1277 = vmul.u32 %v1274, 52429
        %v1278 = vmul.u32 %v1274, 52428
        %v1279 = vmul.u32 %v1275, 52429
        %v1280 = vmul.u32 %v1275, 52428
        %v1281 = vshll.u32 %v1278, 16
        %v1282 = vshrl.u32 %v1278, 16
        %v1283 = vshll.u32 %v1279, 16
        %v1284 = vshrl.u32 %v1279, 16
        %vm1285 = vc.u32 %v1277, %v1281
        %v1286 = vsel %vm1285, 1, 0
        %v1287 = vadd.s32 %v1277, %v1281
        %v1288 = vadd.s32 %v1280, %v1286
        %vm1289 = vc.u32 %v1287, %v1283
        %v1290 = vsel %vm1289, 1, 0
        %v1291 = vadd.s32 %v1287, %v1283
        %v1292 = vadd.s32 %v1288, %v1290
        %v1293 = vadd.s32 %v1292, %v1282
        %v1294 = vadd.s32 %v1293, %v1284
        %v1295 = vshrl.u32 %v1294, 3
        %v1296 = vmul.u32 %v1295, 10
        %v1297 = vsub.s32 %v1273, %v1296
        %v1298 = vsub.s32 0, %v1297
        %v1299 = vsel %vm1271, %v1298, %v1297
        %vm1300 = vcmp.ne.s32.totalorder %v1038, 0
        %vm1301 = vcmp.ne.s32.totalorder %v1067, 0
        %vm1302 = vcmp.ne.s32.totalorder %v1096, 0
        %vm1303 = vcmp.ne.s32.totalorder %v1125, 0
        %vm1304 = vcmp.ne.s32.totalorder %v1154, 0
        %vm1305 = vcmp.ne.s32.totalorder %v1183, 0
        %vm1306 = vcmp.ne.s32.totalorder %v1212, 0
        %vm1307 = vcmp.ne.s32.totalorder %v1241, 0
        %vm1308 = vcmp.ne.s32.totalorder %v1270, 0
        %vm1309 = vcmp.ne.s32.totalorder %v1299, 0
        %vm1310 = vcmp.lt.s32.totalorder %v1038, 0
        %vm1311 = vcmp.lt.s32.totalorder %v1067, 0
        %vm1312 = vcmp.lt.s32.totalorder %v1096, 0
        %vm1313 = vcmp.lt.s32.totalorder %v1125, 0
        %vm1314 = vcmp.lt.s32.totalorder %v1154, 0
        %vm1315 = vcmp.lt.s32.totalorder %v1183, 0
        %vm1316 = vcmp.lt.s32.totalorder %v1212, 0
        %vm1317 = vcmp.lt.s32.totalorder %v1241, 0
        %vm1318 = vcmp.lt.s32.totalorder %v1270, 0
        %vm1319 = vcmp.lt.s32.totalorder %v1299, 0
        %vm1320 = vmand %vm1310, %vm1300
        %vm1321 = vmand %vm1311, %vm1301
        %vm1322 = vmand %vm1312, %vm1302
        %vm1323 = vmand %vm1313, %vm1303
        %vm1324 = vmand %vm1314, %vm1304
        %vm1325 = vmand %vm1315, %vm1305
        %vm1326 = vmand %vm1316, %vm1306
        %vm1327 = vmand %vm1317, %vm1307
        %vm1328 = vmand %vm1318, %vm1308
        %vm1329 = vmand %vm1319, %vm1309
        %v1330 = vadd.s32 %v1038, 10
        %v1331 = vadd.s32 %v1067, 10
        %v1332 = vadd.s32 %v1096, 10
        %v1333 = vadd.s32 %v1125, 10
        %v1334 = vadd.s32 %v1154, 10
        %v1335 = vadd.s32 %v1183, 10
        %v1336 = vadd.s32 %v1212, 10
        %v1337 = vadd.s32 %v1241, 10
        %v1338 = vadd.s32 %v1270, 10
        %v1339 = vadd.s32 %v1299, 10
        %v1340 = vsel %vm1320, %v1330, %v1038
        %v1341 = vsel %vm1321, %v1331, %v1067
        %v1342 = vsel %vm1322, %v1332, %v1096
        %v1343 = vsel %vm1323, %v1333, %v1125
        %v1344 = vsel %vm1324, %v1334, %v1154
        %v1345 = vsel %vm1325, %v1335, %v1183
        %v1346 = vsel %vm1326, %v1336, %v1212
        %v1347 = vsel %vm1327, %v1337, %v1241
        %v1348 = vsel %vm1328, %v1338, %v1270
        %v1349 = vsel %vm1329, %v1339, %v1299
        %vm1350 = vcmp.lt.s32.totalorder %v1340, 8
        %vm1351 = vcmp.lt.s32.totalorder %v1341, 8
        %vm1352 = vcmp.lt.s32.totalorder %v1342, 8
        %vm1353 = vcmp.lt.s32.totalorder %v1343, 8
        %vm1354 = vcmp.lt.s32.totalorder %v1344, 8
        %vm1355 = vcmp.lt.s32.totalorder %v1345, 8
        %vm1356 = vcmp.lt.s32.totalorder %v1346, 8
        %vm1357 = vcmp.lt.s32.totalorder %v1347, 8
        %vm1358 = vcmp.lt.s32.totalorder %v1348, 8
        %vm1359 = vcmp.lt.s32.totalorder %v1349, 8
        %v1360 = vsel %vm1350, 1, 0
        %v1361 = vsel %vm1351, 1, 0
        %v1362 = vsel %vm1352, 1, 0
        %v1363 = vsel %vm1353, 1, 0
        %v1364 = vsel %vm1354, 1, 0
        %v1365 = vsel %vm1355, 1, 0
        %v1366 = vsel %vm1356, 1, 0
        %v1367 = vsel %vm1357, 1, 0
        %v1368 = vsel %vm1358, 1, 0
        %v1369 = vsel %vm1359, 1, 0
        %vm1370 = vcmp.eq.s32.totalorder %v1360, 1
        %vm1371 = vcmp.eq.s32.totalorder %v1361, 1
        %vm1372 = vcmp.eq.s32.totalorder %v1362, 1
        %vm1373 = vcmp.eq.s32.totalorder %v1363, 1
        %vm1374 = vcmp.eq.s32.totalorder %v1364, 1
        %vm1375 = vcmp.eq.s32.totalorder %v1365, 1
        %vm1376 = vcmp.eq.s32.totalorder %v1366, 1
        %vm1377 = vcmp.eq.s32.totalorder %v1367, 1
        %vm1378 = vcmp.eq.s32.totalorder %v1368, 1
        %vm1379 = vcmp.eq.s32.totalorder %v1369, 1
        %v1380 = vsel %vm1370, %v989, 0.0
        %v1381 = vsel %vm1371, %v990, 0.0
        %v1382 = vsel %vm1372, %v991, 0.0
        %v1383 = vsel %vm1373, %v992, 0.0
        %v1384 = vsel %vm1374, %v993, 0.0
        %v1385 = vsel %vm1375, %v994, 0.0
        %v1386 = vsel %vm1376, %v995, 0.0
        %v1387 = vsel %vm1377, %v996, 0.0
        %v1388 = vsel %vm1378, %v997, 0.0
        %v1389 = vsel %vm1379, %v998, 0.0
        %1390 = vst [vmem:[#allocation3] sm:$0xff] 0.0
        %1391 = vst [vmem:[#allocation3 + $0x8] sm:$0x7] 0.0
        %1392 = vst [vmem:[#allocation3 + $0x5b] sm:$0xff] 0.0
        %1393 = vst [vmem:[#allocation3 + $0x63] sm:$0x1f] 0.0
        %1394 = vst [vmem:[#allocation3 + $0xb] sm:$0xff] %v1380
        %1395 = vst [vmem:[#allocation3 + $0x13] sm:$0xff] %v1381
        %1396 = vst [vmem:[#allocation3 + $0x1b] sm:$0xff] %v1382
        %1397 = vst [vmem:[#allocation3 + $0x23] sm:$0xff] %v1383
        %1398 = vst [vmem:[#allocation3 + $0x2b] sm:$0xff] %v1384
        %1399 = vst [vmem:[#allocation3 + $0x33] sm:$0xff] %v1385
        %1400 = vst [vmem:[#allocation3 + $0x3b] sm:$0xff] %v1386
        %1401 = vst [vmem:[#allocation3 + $0x43] sm:$0xff] %v1387
        %1402 = vst [vmem:[#allocation3 + $0x4b] sm:$0xff] %v1388
        %1403 = vst [vmem:[#allocation3 + $0x53] sm:$0xff] %v1389
        %v1404 = vld [vmem:[#allocation3] sm:$0xff]
        %v1405 = vld [vmem:[#allocation3 + $0x8] sm:$0xff]
        %v1406 = vld [vmem:[#allocation3 + $0x10] sm:$0xff]
        %v1407 = vld [vmem:[#allocation3 + $0x18] sm:$0xff]
        %v1408 = vld [vmem:[#allocation3 + $0x20] sm:$0xff]
        %v1409 = vld [vmem:[#allocation3 + $0x28] sm:$0xff]
        %v1410 = vld [vmem:[#allocation3 + $0x30] sm:$0xff]
        %v1411 = vld [vmem:[#allocation3 + $0x38] sm:$0xff]
        %v1412 = vld [vmem:[#allocation3 + $0x40] sm:$0xff]
        %v1413 = vld [vmem:[#allocation3 + $0x48] sm:$0xff]
        %v1414 = vpack.c.bf16 %v1405, %v1404
        %v1415 = vpack.c.bf16 %v1407, %v1406
        %v1416 = vpack.c.bf16 %v1409, %v1408
        %v1417 = vpack.c.bf16 %v1411, %v1410
        %v1418 = vpack.c.bf16 %v1413, %v1412
        %v1419 = vld [vmem:[#allocation9] sm:$0xf]
        %v1420 = vld [vmem:[#allocation9 + $0x4] sm:$0xf]
        %v1421 = vld [vmem:[#allocation9 + $0x8] sm:$0xf]
        %v1422 = vld [vmem:[#allocation9 + $0xc] sm:$0xf]
        %v1423 = vld [vmem:[#allocation9 + $0x10] sm:$0xf]
        %v1424 = vld [vmem:[#allocation9 + $0x14] sm:$0xf]
        %v1425 = vld [vmem:[#allocation9 + $0x18] sm:$0xf]
        %v1426 = vld [vmem:[#allocation9 + $0x1c] sm:$0xf]
        %v1427 = vld [vmem:[#allocation9 + $0x20] sm:$0xf]
        %v1428 = vld [vmem:[#allocation9 + $0x24] sm:$0xf]
        %v1429 = vld [vmem:[#allocation9 + $0x28] sm:$0xf]
        %v1430 = vld [vmem:[#allocation9 + $0x2c] sm:$0xf]
        %v1431 = vld [vmem:[#allocation9 + $0x30] sm:$0xf]
        %v1432 = vld [vmem:[#allocation9 + $0x34] sm:$0xf]
        %v1433 = vld [vmem:[#allocation9 + $0x38] sm:$0xf]
        %v1434 = vld [vmem:[#allocation9 + $0x3c] sm:$0xf]
        %v1435 = vld [vmem:[#allocation3 + $0x1] sm:$0xff]
        %v1436 = vld [vmem:[#allocation3 + $0x9] sm:$0xff]
        %v1437 = vld [vmem:[#allocation3 + $0x11] sm:$0xff]
        %v1438 = vld [vmem:[#allocation3 + $0x19] sm:$0xff]
        %v1439 = vld [vmem:[#allocation3 + $0x21] sm:$0xff]
        %v1440 = vld [vmem:[#allocation3 + $0x29] sm:$0xff]
        %v1441 = vld [vmem:[#allocation3 + $0x31] sm:$0xff]
        %v1442 = vld [vmem:[#allocation3 + $0x39] sm:$0xff]
        %v1443 = vld [vmem:[#allocation3 + $0x41] sm:$0xff]
        %v1444 = vld [vmem:[#allocation3 + $0x49] sm:$0xff]
        %v1445 = vpack.c.bf16 %v1436, %v1435
        %v1446 = vpack.c.bf16 %v1438, %v1437
        %v1447 = vpack.c.bf16 %v1440, %v1439
        %v1448 = vpack.c.bf16 %v1442, %v1441
        %v1449 = vpack.c.bf16 %v1444, %v1443
        %s1450 = scalar_lea.vmem [#allocation9], 64
        %v1451 = vld [vmem:[%s1450] sm:$0xf]
        %v1452 = vld [vmem:[%s1450 + $0x4] sm:$0xf]
        %v1453 = vld [vmem:[%s1450 + $0x8] sm:$0xf]
        %v1454 = vld [vmem:[%s1450 + $0xc] sm:$0xf]
        %v1455 = vld [vmem:[%s1450 + $0x10] sm:$0xf]
        %v1456 = vld [vmem:[%s1450 + $0x14] sm:$0xf]
        %v1457 = vld [vmem:[%s1450 + $0x18] sm:$0xf]
        %v1458 = vld [vmem:[%s1450 + $0x1c] sm:$0xf]
        %v1459 = vld [vmem:[%s1450 + $0x20] sm:$0xf]
        %v1460 = vld [vmem:[%s1450 + $0x24] sm:$0xf]
        %v1461 = vld [vmem:[%s1450 + $0x28] sm:$0xf]
        %v1462 = vld [vmem:[%s1450 + $0x2c] sm:$0xf]
        %v1463 = vld [vmem:[%s1450 + $0x30] sm:$0xf]
        %v1464 = vld [vmem:[%s1450 + $0x34] sm:$0xf]
        %v1465 = vld [vmem:[%s1450 + $0x38] sm:$0xf]
        %v1466 = vld [vmem:[%s1450 + $0x3c] sm:$0xf]
        %v1483 = vunpack.c.l.b16 %v1451
        %v1484 = vunpack.c.l.b16 %v1452
        %v1485 = vunpack.c.l.b16 %v1453
        %v1486 = vunpack.c.l.b16 %v1454
        %v1487 = vunpack.c.l.b16 %v1455
        %v1488 = vunpack.c.l.b16 %v1456
        %v1489 = vunpack.c.l.b16 %v1457
        %v1490 = vunpack.c.l.b16 %v1458
        %v1491 = vunpack.c.l.b16 %v1459
        %v1492 = vunpack.c.l.b16 %v1460
        %v1493 = vunpack.c.l.b16 %v1461
        %v1494 = vunpack.c.l.b16 %v1462
        %v1495 = vunpack.c.l.b16 %v1463
        %v1496 = vunpack.c.l.b16 %v1464
        %v1497 = vunpack.c.l.b16 %v1465
        %v1498 = vunpack.c.l.b16 %v1466
        %v1499 = vpack.c.b16 %v1484, %v1483
        %v1500 = vpack.c.b16 %v1486, %v1485
        %v1501 = vpack.c.b16 %v1488, %v1487
        %v1502 = vpack.c.b16 %v1490, %v1489
        %v1503 = vpack.c.b16 %v1492, %v1491
        %v1504 = vpack.c.b16 %v1494, %v1493
        %v1505 = vpack.c.b16 %v1496, %v1495
        %v1506 = vpack.c.b16 %v1498, %v1497
        %1515 = vmatpush.bf16.msra.mxu0 %v1506
        %1516 = vmatpush.bf16.msra.mxu0 %v1505
        %1517 = vmatpush.bf16.msra.mxu0 %v1504
        %1518 = vmatpush.bf16.msra.mxu0 %v1503
        %1519 = vmatpush.bf16.msra.mxu0 %v1502
        %1520 = vmatpush.bf16.msra.mxu0 %v1501
        %1521 = vmatpush.bf16.msra.mxu0 %v1500
        %1522 = vmatpush.bf16.msra.mxu0 %v1499
        %1523 = vmatmul.bf16.gmra.mxu0 %v1445
        %v1524 = vpop.f32.mrf.mxu0
        %v1525 = vadd.f32 0.0, %v1524
        %v1526 = vpop.f32.mrf.mxu0
        %v1527 = vadd.f32 0.0, %v1526
        %1528 = vmatmul.bf16.gmra.mxu0 %v1446
        %v1529 = vpop.f32.mrf.mxu0
        %v1530 = vadd.f32 0.0, %v1529
        %v1531 = vpop.f32.mrf.mxu0
        %v1532 = vadd.f32 0.0, %v1531
        %1533 = vmatmul.bf16.gmra.mxu0 %v1447
        %v1534 = vpop.f32.mrf.mxu0
        %v1535 = vadd.f32 0.0, %v1534
        %v1536 = vpop.f32.mrf.mxu0
        %v1537 = vadd.f32 0.0, %v1536
        %1538 = vmatmul.bf16.gmra.mxu0 %v1448
        %v1539 = vpop.f32.mrf.mxu0
        %v1540 = vadd.f32 0.0, %v1539
        %v1541 = vpop.f32.mrf.mxu0
        %v1542 = vadd.f32 0.0, %v1541
        %1543 = vmatmul.bf16.gmra.mxu0 %v1449
        %v1544 = vpop.f32.mrf.mxu0
        %v1545 = vadd.f32 0.0, %v1544
        %v1546 = vpop.f32.mrf.mxu0
        %v1547 = vadd.f32 0.0, %v1546
        %1548 = vdwg.mxu0
        %v1565 = vunpack.c.l.b16 %v1419
        %v1566 = vunpack.c.l.b16 %v1420
        %v1567 = vunpack.c.l.b16 %v1421
        %v1568 = vunpack.c.l.b16 %v1422
        %v1569 = vunpack.c.l.b16 %v1423
        %v1570 = vunpack.c.l.b16 %v1424
        %v1571 = vunpack.c.l.b16 %v1425
        %v1572 = vunpack.c.l.b16 %v1426
        %v1573 = vunpack.c.l.b16 %v1427
        %v1574 = vunpack.c.l.b16 %v1428
        %v1575 = vunpack.c.l.b16 %v1429
        %v1576 = vunpack.c.l.b16 %v1430
        %v1577 = vunpack.c.l.b16 %v1431
        %v1578 = vunpack.c.l.b16 %v1432
        %v1579 = vunpack.c.l.b16 %v1433
        %v1580 = vunpack.c.l.b16 %v1434
        %v1581 = vpack.c.b16 %v1566, %v1565
        %v1582 = vpack.c.b16 %v1568, %v1567
        %v1583 = vpack.c.b16 %v1570, %v1569
        %v1584 = vpack.c.b16 %v1572, %v1571
        %v1585 = vpack.c.b16 %v1574, %v1573
        %v1586 = vpack.c.b16 %v1576, %v1575
        %v1587 = vpack.c.b16 %v1578, %v1577
        %v1588 = vpack.c.b16 %v1580, %v1579
        %1597 = vmatpush.bf16.msra.mxu0 %v1588
        %1598 = vmatpush.bf16.msra.mxu0 %v1587
        %1599 = vmatpush.bf16.msra.mxu0 %v1586
        %1600 = vmatpush.bf16.msra.mxu0 %v1585
        %1601 = vmatpush.bf16.msra.mxu0 %v1584
        %1602 = vmatpush.bf16.msra.mxu0 %v1583
        %1603 = vmatpush.bf16.msra.mxu0 %v1582
        %1604 = vmatpush.bf16.msra.mxu0 %v1581
        %1605 = vmatmul.bf16.gmra.mxu0 %v1414
        %v1606 = vpop.f32.mrf.mxu0
        %v1607 = vadd.f32 %v1525, %v1606
        %v1608 = vpop.f32.mrf.mxu0
        %v1609 = vadd.f32 %v1527, %v1608
        %1610 = vmatmul.bf16.gmra.mxu0 %v1415
        %v1611 = vpop.f32.mrf.mxu0
        %v1612 = vadd.f32 %v1530, %v1611
        %v1613 = vpop.f32.mrf.mxu0
        %v1614 = vadd.f32 %v1532, %v1613
        %1615 = vmatmul.bf16.gmra.mxu0 %v1416
        %v1616 = vpop.f32.mrf.mxu0
        %v1617 = vadd.f32 %v1535, %v1616
        %v1618 = vpop.f32.mrf.mxu0
        %v1619 = vadd.f32 %v1537, %v1618
        %1620 = vmatmul.bf16.gmra.mxu0 %v1417
        %v1621 = vpop.f32.mrf.mxu0
        %v1622 = vadd.f32 %v1540, %v1621
        %v1623 = vpop.f32.mrf.mxu0
        %v1624 = vadd.f32 %v1542, %v1623
        %1625 = vmatmul.bf16.gmra.mxu0 %v1418
        %v1626 = vpop.f32.mrf.mxu0
        %v1627 = vadd.f32 %v1545, %v1626
        %v1628 = vpop.f32.mrf.mxu0
        %v1629 = vadd.f32 %v1547, %v1628
        %1630 = vdwg.mxu0
        %v1631 = vld [vmem:[#allocation3 + $0x2] sm:$0xff]
        %v1632 = vld [vmem:[#allocation3 + $0xa] sm:$0xff]
        %v1633 = vld [vmem:[#allocation3 + $0x12] sm:$0xff]
        %v1634 = vld [vmem:[#allocation3 + $0x1a] sm:$0xff]
        %v1635 = vld [vmem:[#allocation3 + $0x22] sm:$0xff]
        %v1636 = vld [vmem:[#allocation3 + $0x2a] sm:$0xff]
        %v1637 = vld [vmem:[#allocation3 + $0x32] sm:$0xff]
        %v1638 = vld [vmem:[#allocation3 + $0x3a] sm:$0xff]
        %v1639 = vld [vmem:[#allocation3 + $0x42] sm:$0xff]
        %v1640 = vld [vmem:[#allocation3 + $0x4a] sm:$0xff]
        %v1641 = vpack.c.bf16 %v1632, %v1631
        %v1642 = vpack.c.bf16 %v1634, %v1633
        %v1643 = vpack.c.bf16 %v1636, %v1635
        %v1644 = vpack.c.bf16 %v1638, %v1637
        %v1645 = vpack.c.bf16 %v1640, %v1639
        %s1646 = scalar_lea.vmem [#allocation9], 128
        %v1647 = vld [vmem:[%s1646] sm:$0xf]
        %v1648 = vld [vmem:[%s1646 + $0x4] sm:$0xf]
        %v1649 = vld [vmem:[%s1646 + $0x8] sm:$0xf]
        %v1650 = vld [vmem:[%s1646 + $0xc] sm:$0xf]
        %v1651 = vld [vmem:[%s1646 + $0x10] sm:$0xf]
        %v1652 = vld [vmem:[%s1646 + $0x14] sm:$0xf]
        %v1653 = vld [vmem:[%s1646 + $0x18] sm:$0xf]
        %v1654 = vld [vmem:[%s1646 + $0x1c] sm:$0xf]
        %v1655 = vld [vmem:[%s1646 + $0x20] sm:$0xf]
        %v1656 = vld [vmem:[%s1646 + $0x24] sm:$0xf]
        %v1657 = vld [vmem:[%s1646 + $0x28] sm:$0xf]
        %v1658 = vld [vmem:[%s1646 + $0x2c] sm:$0xf]
        %v1659 = vld [vmem:[%s1646 + $0x30] sm:$0xf]
        %v1660 = vld [vmem:[%s1646 + $0x34] sm:$0xf]
        %v1661 = vld [vmem:[%s1646 + $0x38] sm:$0xf]
        %v1662 = vld [vmem:[%s1646 + $0x3c] sm:$0xf]
        %v1679 = vunpack.c.l.b16 %v1647
        %v1680 = vunpack.c.l.b16 %v1648
        %v1681 = vunpack.c.l.b16 %v1649
        %v1682 = vunpack.c.l.b16 %v1650
        %v1683 = vunpack.c.l.b16 %v1651
        %v1684 = vunpack.c.l.b16 %v1652
        %v1685 = vunpack.c.l.b16 %v1653
        %v1686 = vunpack.c.l.b16 %v1654
        %v1687 = vunpack.c.l.b16 %v1655
        %v1688 = vunpack.c.l.b16 %v1656
        %v1689 = vunpack.c.l.b16 %v1657
        %v1690 = vunpack.c.l.b16 %v1658
        %v1691 = vunpack.c.l.b16 %v1659
        %v1692 = vunpack.c.l.b16 %v1660
        %v1693 = vunpack.c.l.b16 %v1661
        %v1694 = vunpack.c.l.b16 %v1662
        %v1695 = vpack.c.b16 %v1680, %v1679
        %v1696 = vpack.c.b16 %v1682, %v1681
        %v1697 = vpack.c.b16 %v1684, %v1683
        %v1698 = vpack.c.b16 %v1686, %v1685
        %v1699 = vpack.c.b16 %v1688, %v1687
        %v1700 = vpack.c.b16 %v1690, %v1689
        %v1701 = vpack.c.b16 %v1692, %v1691
        %v1702 = vpack.c.b16 %v1694, %v1693
        %1711 = vmatpush.bf16.msra.mxu0 %v1702
        %1712 = vmatpush.bf16.msra.mxu0 %v1701
        %1713 = vmatpush.bf16.msra.mxu0 %v1700
        %1714 = vmatpush.bf16.msra.mxu0 %v1699
        %1715 = vmatpush.bf16.msra.mxu0 %v1698
        %1716 = vmatpush.bf16.msra.mxu0 %v1697
        %1717 = vmatpush.bf16.msra.mxu0 %v1696
        %1718 = vmatpush.bf16.msra.mxu0 %v1695
        %1719 = vmatmul.bf16.gmra.mxu0 %v1641
        %v1720 = vpop.f32.mrf.mxu0
        %v1721 = vadd.f32 0.0, %v1720
        %v1722 = vpop.f32.mrf.mxu0
        %v1723 = vadd.f32 0.0, %v1722
        %1724 = vmatmul.bf16.gmra.mxu0 %v1642
        %v1725 = vpop.f32.mrf.mxu0
        %v1726 = vadd.f32 0.0, %v1725
        %v1727 = vpop.f32.mrf.mxu0
        %v1728 = vadd.f32 0.0, %v1727
        %1729 = vmatmul.bf16.gmra.mxu0 %v1643
        %v1730 = vpop.f32.mrf.mxu0
        %v1731 = vadd.f32 0.0, %v1730
        %v1732 = vpop.f32.mrf.mxu0
        %v1733 = vadd.f32 0.0, %v1732
        %1734 = vmatmul.bf16.gmra.mxu0 %v1644
        %v1735 = vpop.f32.mrf.mxu0
        %v1736 = vadd.f32 0.0, %v1735
        %v1737 = vpop.f32.mrf.mxu0
        %v1738 = vadd.f32 0.0, %v1737
        %1739 = vmatmul.bf16.gmra.mxu0 %v1645
        %v1740 = vpop.f32.mrf.mxu0
        %v1741 = vadd.f32 0.0, %v1740
        %v1742 = vpop.f32.mrf.mxu0
        %v1743 = vadd.f32 0.0, %v1742
        %1744 = vdwg.mxu0
        %v1745 = vadd.f32 %v1607, %v1721
        %v1746 = vadd.f32 %v1609, %v1723
        %v1747 = vadd.f32 %v1612, %v1726
        %v1748 = vadd.f32 %v1614, %v1728
        %v1749 = vadd.f32 %v1617, %v1731
        %v1750 = vadd.f32 %v1619, %v1733
        %v1751 = vadd.f32 %v1622, %v1736
        %v1752 = vadd.f32 %v1624, %v1738
        %v1753 = vadd.f32 %v1627, %v1741
        %v1754 = vadd.f32 %v1629, %v1743
        %v1755 = vld [vmem:[#allocation3 + $0xa] sm:$0xff]
        %v1756 = vld [vmem:[#allocation3 + $0x12] sm:$0xff]
        %v1757 = vld [vmem:[#allocation3 + $0x1a] sm:$0xff]
        %v1758 = vld [vmem:[#allocation3 + $0x22] sm:$0xff]
        %v1759 = vld [vmem:[#allocation3 + $0x2a] sm:$0xff]
        %v1760 = vld [vmem:[#allocation3 + $0x32] sm:$0xff]
        %v1761 = vld [vmem:[#allocation3 + $0x3a] sm:$0xff]
        %v1762 = vld [vmem:[#allocation3 + $0x42] sm:$0xff]
        %v1763 = vld [vmem:[#allocation3 + $0x4a] sm:$0xff]
        %v1764 = vld [vmem:[#allocation3 + $0x52] sm:$0xff]
        %v1765 = vpack.c.bf16 %v1756, %v1755
        %v1766 = vpack.c.bf16 %v1758, %v1757
        %v1767 = vpack.c.bf16 %v1760, %v1759
        %v1768 = vpack.c.bf16 %v1762, %v1761
        %v1769 = vpack.c.bf16 %v1764, %v1763
        %s1770 = scalar_lea.vmem [#allocation9], 192
        %v1771 = vld [vmem:[%s1770] sm:$0xf]
        %v1772 = vld [vmem:[%s1770 + $0x4] sm:$0xf]
        %v1773 = vld [vmem:[%s1770 + $0x8] sm:$0xf]
        %v1774 = vld [vmem:[%s1770 + $0xc] sm:$0xf]
        %v1775 = vld [vmem:[%s1770 + $0x10] sm:$0xf]
        %v1776 = vld [vmem:[%s1770 + $0x14] sm:$0xf]
        %v1777 = vld [vmem:[%s1770 + $0x18] sm:$0xf]
        %v1778 = vld [vmem:[%s1770 + $0x1c] sm:$0xf]
        %v1779 = vld [vmem:[%s1770 + $0x20] sm:$0xf]
        %v1780 = vld [vmem:[%s1770 + $0x24] sm:$0xf]
        %v1781 = vld [vmem:[%s1770 + $0x28] sm:$0xf]
        %v1782 = vld [vmem:[%s1770 + $0x2c] sm:$0xf]
        %v1783 = vld [vmem:[%s1770 + $0x30] sm:$0xf]
        %v1784 = vld [vmem:[%s1770 + $0x34] sm:$0xf]
        %v1785 = vld [vmem:[%s1770 + $0x38] sm:$0xf]
        %v1786 = vld [vmem:[%s1770 + $0x3c] sm:$0xf]
        %v1803 = vunpack.c.l.b16 %v1771
        %v1804 = vunpack.c.l.b16 %v1772
        %v1805 = vunpack.c.l.b16 %v1773
        %v1806 = vunpack.c.l.b16 %v1774
        %v1807 = vunpack.c.l.b16 %v1775
        %v1808 = vunpack.c.l.b16 %v1776
        %v1809 = vunpack.c.l.b16 %v1777
        %v1810 = vunpack.c.l.b16 %v1778
        %v1811 = vunpack.c.l.b16 %v1779
        %v1812 = vunpack.c.l.b16 %v1780
        %v1813 = vunpack.c.l.b16 %v1781
        %v1814 = vunpack.c.l.b16 %v1782
        %v1815 = vunpack.c.l.b16 %v1783
        %v1816 = vunpack.c.l.b16 %v1784
        %v1817 = vunpack.c.l.b16 %v1785
        %v1818 = vunpack.c.l.b16 %v1786
        %v1819 = vpack.c.b16 %v1804, %v1803
        %v1820 = vpack.c.b16 %v1806, %v1805
        %v1821 = vpack.c.b16 %v1808, %v1807
        %v1822 = vpack.c.b16 %v1810, %v1809
        %v1823 = vpack.c.b16 %v1812, %v1811
        %v1824 = vpack.c.b16 %v1814, %v1813
        %v1825 = vpack.c.b16 %v1816, %v1815
        %v1826 = vpack.c.b16 %v1818, %v1817
        %1835 = vmatpush.bf16.msra.mxu0 %v1826
        %1836 = vmatpush.bf16.msra.mxu0 %v1825
        %1837 = vmatpush.bf16.msra.mxu0 %v1824
        %1838 = vmatpush.bf16.msra.mxu0 %v1823
        %1839 = vmatpush.bf16.msra.mxu0 %v1822
        %1840 = vmatpush.bf16.msra.mxu0 %v1821
        %1841 = vmatpush.bf16.msra.mxu0 %v1820
        %1842 = vmatpush.bf16.msra.mxu0 %v1819
        %1843 = vmatmul.bf16.gmra.mxu0 %v1765
        %v1844 = vpop.f32.mrf.mxu0
        %v1845 = vadd.f32 0.0, %v1844
        %v1846 = vpop.f32.mrf.mxu0
        %v1847 = vadd.f32 0.0, %v1846
        %1848 = vmatmul.bf16.gmra.mxu0 %v1766
        %v1849 = vpop.f32.mrf.mxu0
        %v1850 = vadd.f32 0.0, %v1849
        %v1851 = vpop.f32.mrf.mxu0
        %v1852 = vadd.f32 0.0, %v1851
        %1853 = vmatmul.bf16.gmra.mxu0 %v1767
        %v1854 = vpop.f32.mrf.mxu0
        %v1855 = vadd.f32 0.0, %v1854
        %v1856 = vpop.f32.mrf.mxu0
        %v1857 = vadd.f32 0.0, %v1856
        %1858 = vmatmul.bf16.gmra.mxu0 %v1768
        %v1859 = vpop.f32.mrf.mxu0
        %v1860 = vadd.f32 0.0, %v1859
        %v1861 = vpop.f32.mrf.mxu0
        %v1862 = vadd.f32 0.0, %v1861
        %1863 = vmatmul.bf16.gmra.mxu0 %v1769
        %v1864 = vpop.f32.mrf.mxu0
        %v1865 = vadd.f32 0.0, %v1864
        %v1866 = vpop.f32.mrf.mxu0
        %v1867 = vadd.f32 0.0, %v1866
        %1868 = vdwg.mxu0
        %v1869 = vadd.f32 %v1745, %v1845
        %v1870 = vadd.f32 %v1746, %v1847
        %v1871 = vadd.f32 %v1747, %v1850
        %v1872 = vadd.f32 %v1748, %v1852
        %v1873 = vadd.f32 %v1749, %v1855
        %v1874 = vadd.f32 %v1750, %v1857
        %v1875 = vadd.f32 %v1751, %v1860
        %v1876 = vadd.f32 %v1752, %v1862
        %v1877 = vadd.f32 %v1753, %v1865
        %v1878 = vadd.f32 %v1754, %v1867
        %v1879 = vld [vmem:[#allocation3 + $0xb] sm:$0xff]
        %v1880 = vld [vmem:[#allocation3 + $0x13] sm:$0xff]
        %v1881 = vld [vmem:[#allocation3 + $0x1b] sm:$0xff]
        %v1882 = vld [vmem:[#allocation3 + $0x23] sm:$0xff]
        %v1883 = vld [vmem:[#allocation3 + $0x2b] sm:$0xff]
        %v1884 = vld [vmem:[#allocation3 + $0x33] sm:$0xff]
        %v1885 = vld [vmem:[#allocation3 + $0x3b] sm:$0xff]
        %v1886 = vld [vmem:[#allocation3 + $0x43] sm:$0xff]
        %v1887 = vld [vmem:[#allocation3 + $0x4b] sm:$0xff]
        %v1888 = vld [vmem:[#allocation3 + $0x53] sm:$0xff]
        %v1889 = vpack.c.bf16 %v1880, %v1879
        %v1890 = vpack.c.bf16 %v1882, %v1881
        %v1891 = vpack.c.bf16 %v1884, %v1883
        %v1892 = vpack.c.bf16 %v1886, %v1885
        %v1893 = vpack.c.bf16 %v1888, %v1887
        %s1894 = scalar_lea.vmem [#allocation9], 256
        %v1895 = vld [vmem:[%s1894] sm:$0xf]
        %v1896 = vld [vmem:[%s1894 + $0x4] sm:$0xf]
        %v1897 = vld [vmem:[%s1894 + $0x8] sm:$0xf]
        %v1898 = vld [vmem:[%s1894 + $0xc] sm:$0xf]
        %v1899 = vld [vmem:[%s1894 + $0x10] sm:$0xf]
        %v1900 = vld [vmem:[%s1894 + $0x14] sm:$0xf]
        %v1901 = vld [vmem:[%s1894 + $0x18] sm:$0xf]
        %v1902 = vld [vmem:[%s1894 + $0x1c] sm:$0xf]
        %v1903 = vld [vmem:[%s1894 + $0x20] sm:$0xf]
        %v1904 = vld [vmem:[%s1894 + $0x24] sm:$0xf]
        %v1905 = vld [vmem:[%s1894 + $0x28] sm:$0xf]
        %v1906 = vld [vmem:[%s1894 + $0x2c] sm:$0xf]
        %v1907 = vld [vmem:[%s1894 + $0x30] sm:$0xf]
        %v1908 = vld [vmem:[%s1894 + $0x34] sm:$0xf]
        %v1909 = vld [vmem:[%s1894 + $0x38] sm:$0xf]
        %v1910 = vld [vmem:[%s1894 + $0x3c] sm:$0xf]
        %v1927 = vunpack.c.l.b16 %v1895
        %v1928 = vunpack.c.l.b16 %v1896
        %v1929 = vunpack.c.l.b16 %v1897
        %v1930 = vunpack.c.l.b16 %v1898
        %v1931 = vunpack.c.l.b16 %v1899
        %v1932 = vunpack.c.l.b16 %v1900
        %v1933 = vunpack.c.l.b16 %v1901
        %v1934 = vunpack.c.l.b16 %v1902
        %v1935 = vunpack.c.l.b16 %v1903
        %v1936 = vunpack.c.l.b16 %v1904
        %v1937 = vunpack.c.l.b16 %v1905
        %v1938 = vunpack.c.l.b16 %v1906
        %v1939 = vunpack.c.l.b16 %v1907
        %v1940 = vunpack.c.l.b16 %v1908
        %v1941 = vunpack.c.l.b16 %v1909
        %v1942 = vunpack.c.l.b16 %v1910
        %v1943 = vpack.c.b16 %v1928, %v1927
        %v1944 = vpack.c.b16 %v1930, %v1929
        %v1945 = vpack.c.b16 %v1932, %v1931
        %v1946 = vpack.c.b16 %v1934, %v1933
        %v1947 = vpack.c.b16 %v1936, %v1935
        %v1948 = vpack.c.b16 %v1938, %v1937
        %v1949 = vpack.c.b16 %v1940, %v1939
        %v1950 = vpack.c.b16 %v1942, %v1941
        %1959 = vmatpush.bf16.msra.mxu0 %v1950
        %1960 = vmatpush.bf16.msra.mxu0 %v1949
        %1961 = vmatpush.bf16.msra.mxu0 %v1948
        %1962 = vmatpush.bf16.msra.mxu0 %v1947
        %1963 = vmatpush.bf16.msra.mxu0 %v1946
        %1964 = vmatpush.bf16.msra.mxu0 %v1945
        %1965 = vmatpush.bf16.msra.mxu0 %v1944
        %1966 = vmatpush.bf16.msra.mxu0 %v1943
        %1967 = vmatmul.bf16.gmra.mxu0 %v1889
        %v1968 = vpop.f32.mrf.mxu0
        %v1969 = vadd.f32 0.0, %v1968
        %v1970 = vpop.f32.mrf.mxu0
        %v1971 = vadd.f32 0.0, %v1970
        %1972 = vmatmul.bf16.gmra.mxu0 %v1890
        %v1973 = vpop.f32.mrf.mxu0
        %v1974 = vadd.f32 0.0, %v1973
        %v1975 = vpop.f32.mrf.mxu0
        %v1976 = vadd.f32 0.0, %v1975
        %1977 = vmatmul.bf16.gmra.mxu0 %v1891
        %v1978 = vpop.f32.mrf.mxu0
        %v1979 = vadd.f32 0.0, %v1978
        %v1980 = vpop.f32.mrf.mxu0
        %v1981 = vadd.f32 0.0, %v1980
        %1982 = vmatmul.bf16.gmra.mxu0 %v1892
        %v1983 = vpop.f32.mrf.mxu0
        %v1984 = vadd.f32 0.0, %v1983
        %v1985 = vpop.f32.mrf.mxu0
        %v1986 = vadd.f32 0.0, %v1985
        %1987 = vmatmul.bf16.gmra.mxu0 %v1893
        %v1988 = vpop.f32.mrf.mxu0
        %v1989 = vadd.f32 0.0, %v1988
        %v1990 = vpop.f32.mrf.mxu0
        %v1991 = vadd.f32 0.0, %v1990
        %1992 = vdwg.mxu0
        %v1993 = vadd.f32 %v1869, %v1969
        %v1994 = vadd.f32 %v1870, %v1971
        %v1995 = vadd.f32 %v1871, %v1974
        %v1996 = vadd.f32 %v1872, %v1976
        %v1997 = vadd.f32 %v1873, %v1979
        %v1998 = vadd.f32 %v1874, %v1981
        %v1999 = vadd.f32 %v1875, %v1984
        %v2000 = vadd.f32 %v1876, %v1986
        %v2001 = vadd.f32 %v1877, %v1989
        %v2002 = vadd.f32 %v1878, %v1991
        %v2003 = vld [vmem:[#allocation3 + $0xc] sm:$0xff]
        %v2004 = vld [vmem:[#allocation3 + $0x14] sm:$0xff]
        %v2005 = vld [vmem:[#allocation3 + $0x1c] sm:$0xff]
        %v2006 = vld [vmem:[#allocation3 + $0x24] sm:$0xff]
        %v2007 = vld [vmem:[#allocation3 + $0x2c] sm:$0xff]
        %v2008 = vld [vmem:[#allocation3 + $0x34] sm:$0xff]
        %v2009 = vld [vmem:[#allocation3 + $0x3c] sm:$0xff]
        %v2010 = vld [vmem:[#allocation3 + $0x44] sm:$0xff]
        %v2011 = vld [vmem:[#allocation3 + $0x4c] sm:$0xff]
        %v2012 = vld [vmem:[#allocation3 + $0x54] sm:$0xff]
        %v2013 = vpack.c.bf16 %v2004, %v2003
        %v2014 = vpack.c.bf16 %v2006, %v2005
        %v2015 = vpack.c.bf16 %v2008, %v2007
        %v2016 = vpack.c.bf16 %v2010, %v2009
        %v2017 = vpack.c.bf16 %v2012, %v2011
        %s2018 = scalar_lea.vmem [#allocation9], 320
        %v2019 = vld [vmem:[%s2018] sm:$0xf]
        %v2020 = vld [vmem:[%s2018 + $0x4] sm:$0xf]
        %v2021 = vld [vmem:[%s2018 + $0x8] sm:$0xf]
        %v2022 = vld [vmem:[%s2018 + $0xc] sm:$0xf]
        %v2023 = vld [vmem:[%s2018 + $0x10] sm:$0xf]
        %v2024 = vld [vmem:[%s2018 + $0x14] sm:$0xf]
        %v2025 = vld [vmem:[%s2018 + $0x18] sm:$0xf]
        %v2026 = vld [vmem:[%s2018 + $0x1c] sm:$0xf]
        %v2027 = vld [vmem:[%s2018 + $0x20] sm:$0xf]
        %v2028 = vld [vmem:[%s2018 + $0x24] sm:$0xf]
        %v2029 = vld [vmem:[%s2018 + $0x28] sm:$0xf]
        %v2030 = vld [vmem:[%s2018 + $0x2c] sm:$0xf]
        %v2031 = vld [vmem:[%s2018 + $0x30] sm:$0xf]
        %v2032 = vld [vmem:[%s2018 + $0x34] sm:$0xf]
        %v2033 = vld [vmem:[%s2018 + $0x38] sm:$0xf]
        %v2034 = vld [vmem:[%s2018 + $0x3c] sm:$0xf]
        %v2051 = vunpack.c.l.b16 %v2019
        %v2052 = vunpack.c.l.b16 %v2020
        %v2053 = vunpack.c.l.b16 %v2021
        %v2054 = vunpack.c.l.b16 %v2022
        %v2055 = vunpack.c.l.b16 %v2023
        %v2056 = vunpack.c.l.b16 %v2024
        %v2057 = vunpack.c.l.b16 %v2025
        %v2058 = vunpack.c.l.b16 %v2026
        %v2059 = vunpack.c.l.b16 %v2027
        %v2060 = vunpack.c.l.b16 %v2028
        %v2061 = vunpack.c.l.b16 %v2029
        %v2062 = vunpack.c.l.b16 %v2030
        %v2063 = vunpack.c.l.b16 %v2031
        %v2064 = vunpack.c.l.b16 %v2032
        %v2065 = vunpack.c.l.b16 %v2033
        %v2066 = vunpack.c.l.b16 %v2034
        %v2067 = vpack.c.b16 %v2052, %v2051
        %v2068 = vpack.c.b16 %v2054, %v2053
        %v2069 = vpack.c.b16 %v2056, %v2055
        %v2070 = vpack.c.b16 %v2058, %v2057
        %v2071 = vpack.c.b16 %v2060, %v2059
        %v2072 = vpack.c.b16 %v2062, %v2061
        %v2073 = vpack.c.b16 %v2064, %v2063
        %v2074 = vpack.c.b16 %v2066, %v2065
        %2083 = vmatpush.bf16.msra.mxu0 %v2074
        %2084 = vmatpush.bf16.msra.mxu0 %v2073
        %2085 = vmatpush.bf16.msra.mxu0 %v2072
        %2086 = vmatpush.bf16.msra.mxu0 %v2071
        %2087 = vmatpush.bf16.msra.mxu0 %v2070
        %2088 = vmatpush.bf16.msra.mxu0 %v2069
        %2089 = vmatpush.bf16.msra.mxu0 %v2068
        %2090 = vmatpush.bf16.msra.mxu0 %v2067
        %2091 = vmatmul.bf16.gmra.mxu0 %v2013
        %v2092 = vpop.f32.mrf.mxu0
        %v2093 = vadd.f32 0.0, %v2092
        %v2094 = vpop.f32.mrf.mxu0
        %v2095 = vadd.f32 0.0, %v2094
        %2096 = vmatmul.bf16.gmra.mxu0 %v2014
        %v2097 = vpop.f32.mrf.mxu0
        %v2098 = vadd.f32 0.0, %v2097
        %v2099 = vpop.f32.mrf.mxu0
        %v2100 = vadd.f32 0.0, %v2099
        %2101 = vmatmul.bf16.gmra.mxu0 %v2015
        %v2102 = vpop.f32.mrf.mxu0
        %v2103 = vadd.f32 0.0, %v2102
        %v2104 = vpop.f32.mrf.mxu0
        %v2105 = vadd.f32 0.0, %v2104
        %2106 = vmatmul.bf16.gmra.mxu0 %v2016
        %v2107 = vpop.f32.mrf.mxu0
        %v2108 = vadd.f32 0.0, %v2107
        %v2109 = vpop.f32.mrf.mxu0
        %v2110 = vadd.f32 0.0, %v2109
        %2111 = vmatmul.bf16.gmra.mxu0 %v2017
        %v2112 = vpop.f32.mrf.mxu0
        %v2113 = vadd.f32 0.0, %v2112
        %v2114 = vpop.f32.mrf.mxu0
        %v2115 = vadd.f32 0.0, %v2114
        %2116 = vdwg.mxu0
        %v2117 = vadd.f32 %v1993, %v2093
        %v2118 = vadd.f32 %v1994, %v2095
        %v2119 = vadd.f32 %v1995, %v2098
        %v2120 = vadd.f32 %v1996, %v2100
        %v2121 = vadd.f32 %v1997, %v2103
        %v2122 = vadd.f32 %v1998, %v2105
        %v2123 = vadd.f32 %v1999, %v2108
        %v2124 = vadd.f32 %v2000, %v2110
        %v2125 = vadd.f32 %v2001, %v2113
        %v2126 = vadd.f32 %v2002, %v2115
        %v2127 = vld [vmem:[#allocation3 + $0x14] sm:$0xff]
        %v2128 = vld [vmem:[#allocation3 + $0x1c] sm:$0xff]
        %v2129 = vld [vmem:[#allocation3 + $0x24] sm:$0xff]
        %v2130 = vld [vmem:[#allocation3 + $0x2c] sm:$0xff]
        %v2131 = vld [vmem:[#allocation3 + $0x34] sm:$0xff]
        %v2132 = vld [vmem:[#allocation3 + $0x3c] sm:$0xff]
        %v2133 = vld [vmem:[#allocation3 + $0x44] sm:$0xff]
        %v2134 = vld [vmem:[#allocation3 + $0x4c] sm:$0xff]
        %v2135 = vld [vmem:[#allocation3 + $0x54] sm:$0xff]
        %v2136 = vld [vmem:[#allocation3 + $0x5c] sm:$0xff]
        %v2137 = vpack.c.bf16 %v2128, %v2127
        %v2138 = vpack.c.bf16 %v2130, %v2129
        %v2139 = vpack.c.bf16 %v2132, %v2131
        %v2140 = vpack.c.bf16 %v2134, %v2133
        %v2141 = vpack.c.bf16 %v2136, %v2135
        %s2142 = scalar_lea.vmem [#allocation9], 384
        %v2143 = vld [vmem:[%s2142] sm:$0xf]
        %v2144 = vld [vmem:[%s2142 + $0x4] sm:$0xf]
        %v2145 = vld [vmem:[%s2142 + $0x8] sm:$0xf]
        %v2146 = vld [vmem:[%s2142 + $0xc] sm:$0xf]
        %v2147 = vld [vmem:[%s2142 + $0x10] sm:$0xf]
        %v2148 = vld [vmem:[%s2142 + $0x14] sm:$0xf]
        %v2149 = vld [vmem:[%s2142 + $0x18] sm:$0xf]
        %v2150 = vld [vmem:[%s2142 + $0x1c] sm:$0xf]
        %v2151 = vld [vmem:[%s2142 + $0x20] sm:$0xf]
        %v2152 = vld [vmem:[%s2142 + $0x24] sm:$0xf]
        %v2153 = vld [vmem:[%s2142 + $0x28] sm:$0xf]
        %v2154 = vld [vmem:[%s2142 + $0x2c] sm:$0xf]
        %v2155 = vld [vmem:[%s2142 + $0x30] sm:$0xf]
        %v2156 = vld [vmem:[%s2142 + $0x34] sm:$0xf]
        %v2157 = vld [vmem:[%s2142 + $0x38] sm:$0xf]
        %v2158 = vld [vmem:[%s2142 + $0x3c] sm:$0xf]
        %v2175 = vunpack.c.l.b16 %v2143
        %v2176 = vunpack.c.l.b16 %v2144
        %v2177 = vunpack.c.l.b16 %v2145
        %v2178 = vunpack.c.l.b16 %v2146
        %v2179 = vunpack.c.l.b16 %v2147
        %v2180 = vunpack.c.l.b16 %v2148
        %v2181 = vunpack.c.l.b16 %v2149
        %v2182 = vunpack.c.l.b16 %v2150
        %v2183 = vunpack.c.l.b16 %v2151
        %v2184 = vunpack.c.l.b16 %v2152
        %v2185 = vunpack.c.l.b16 %v2153
        %v2186 = vunpack.c.l.b16 %v2154
        %v2187 = vunpack.c.l.b16 %v2155
        %v2188 = vunpack.c.l.b16 %v2156
        %v2189 = vunpack.c.l.b16 %v2157
        %v2190 = vunpack.c.l.b16 %v2158
        %v2191 = vpack.c.b16 %v2176, %v2175
        %v2192 = vpack.c.b16 %v2178, %v2177
        %v2193 = vpack.c.b16 %v2180, %v2179
        %v2194 = vpack.c.b16 %v2182, %v2181
        %v2195 = vpack.c.b16 %v2184, %v2183
        %v2196 = vpack.c.b16 %v2186, %v2185
        %v2197 = vpack.c.b16 %v2188, %v2187
        %v2198 = vpack.c.b16 %v2190, %v2189
        %2207 = vmatpush.bf16.msra.mxu0 %v2198
        %2208 = vmatpush.bf16.msra.mxu0 %v2197
        %2209 = vmatpush.bf16.msra.mxu0 %v2196
        %2210 = vmatpush.bf16.msra.mxu0 %v2195
        %2211 = vmatpush.bf16.msra.mxu0 %v2194
        %2212 = vmatpush.bf16.msra.mxu0 %v2193
        %2213 = vmatpush.bf16.msra.mxu0 %v2192
        %2214 = vmatpush.bf16.msra.mxu0 %v2191
        %2215 = vmatmul.bf16.gmra.mxu0 %v2137
        %v2216 = vpop.f32.mrf.mxu0
        %v2217 = vadd.f32 0.0, %v2216
        %v2218 = vpop.f32.mrf.mxu0
        %v2219 = vadd.f32 0.0, %v2218
        %2220 = vmatmul.bf16.gmra.mxu0 %v2138
        %v2221 = vpop.f32.mrf.mxu0
        %v2222 = vadd.f32 0.0, %v2221
        %v2223 = vpop.f32.mrf.mxu0
        %v2224 = vadd.f32 0.0, %v2223
        %2225 = vmatmul.bf16.gmra.mxu0 %v2139
        %v2226 = vpop.f32.mrf.mxu0
        %v2227 = vadd.f32 0.0, %v2226
        %v2228 = vpop.f32.mrf.mxu0
        %v2229 = vadd.f32 0.0, %v2228
        %2230 = vmatmul.bf16.gmra.mxu0 %v2140
        %v2231 = vpop.f32.mrf.mxu0
        %v2232 = vadd.f32 0.0, %v2231
        %v2233 = vpop.f32.mrf.mxu0
        %v2234 = vadd.f32 0.0, %v2233
        %2235 = vmatmul.bf16.gmra.mxu0 %v2141
        %v2236 = vpop.f32.mrf.mxu0
        %v2237 = vadd.f32 0.0, %v2236
        %v2238 = vpop.f32.mrf.mxu0
        %v2239 = vadd.f32 0.0, %v2238
        %2240 = vdwg.mxu0
        %v2241 = vadd.f32 %v2117, %v2217
        %v2242 = vadd.f32 %v2118, %v2219
        %v2243 = vadd.f32 %v2119, %v2222
        %v2244 = vadd.f32 %v2120, %v2224
        %v2245 = vadd.f32 %v2121, %v2227
        %v2246 = vadd.f32 %v2122, %v2229
        %v2247 = vadd.f32 %v2123, %v2232
        %v2248 = vadd.f32 %v2124, %v2234
        %v2249 = vadd.f32 %v2125, %v2237
        %v2250 = vadd.f32 %v2126, %v2239
        %v2251 = vld [vmem:[#allocation3 + $0x15] sm:$0xff]
        %v2252 = vld [vmem:[#allocation3 + $0x1d] sm:$0xff]
        %v2253 = vld [vmem:[#allocation3 + $0x25] sm:$0xff]
        %v2254 = vld [vmem:[#allocation3 + $0x2d] sm:$0xff]
        %v2255 = vld [vmem:[#allocation3 + $0x35] sm:$0xff]
        %v2256 = vld [vmem:[#allocation3 + $0x3d] sm:$0xff]
        %v2257 = vld [vmem:[#allocation3 + $0x45] sm:$0xff]
        %v2258 = vld [vmem:[#allocation3 + $0x4d] sm:$0xff]
        %v2259 = vld [vmem:[#allocation3 + $0x55] sm:$0xff]
        %v2260 = vld [vmem:[#allocation3 + $0x5d] sm:$0xff]
        %v2261 = vpack.c.bf16 %v2252, %v2251
        %v2262 = vpack.c.bf16 %v2254, %v2253
        %v2263 = vpack.c.bf16 %v2256, %v2255
        %v2264 = vpack.c.bf16 %v2258, %v2257
        %v2265 = vpack.c.bf16 %v2260, %v2259
        %s2266 = scalar_lea.vmem [#allocation9], 448
        %v2267 = vld [vmem:[%s2266] sm:$0xf]
        %v2268 = vld [vmem:[%s2266 + $0x4] sm:$0xf]
        %v2269 = vld [vmem:[%s2266 + $0x8] sm:$0xf]
        %v2270 = vld [vmem:[%s2266 + $0xc] sm:$0xf]
        %v2271 = vld [vmem:[%s2266 + $0x10] sm:$0xf]
        %v2272 = vld [vmem:[%s2266 + $0x14] sm:$0xf]
        %v2273 = vld [vmem:[%s2266 + $0x18] sm:$0xf]
        %v2274 = vld [vmem:[%s2266 + $0x1c] sm:$0xf]
        %v2275 = vld [vmem:[%s2266 + $0x20] sm:$0xf]
        %v2276 = vld [vmem:[%s2266 + $0x24] sm:$0xf]
        %v2277 = vld [vmem:[%s2266 + $0x28] sm:$0xf]
        %v2278 = vld [vmem:[%s2266 + $0x2c] sm:$0xf]
        %v2279 = vld [vmem:[%s2266 + $0x30] sm:$0xf]
        %v2280 = vld [vmem:[%s2266 + $0x34] sm:$0xf]
        %v2281 = vld [vmem:[%s2266 + $0x38] sm:$0xf]
        %v2282 = vld [vmem:[%s2266 + $0x3c] sm:$0xf]
        %v2299 = vunpack.c.l.b16 %v2267
        %v2300 = vunpack.c.l.b16 %v2268
        %v2301 = vunpack.c.l.b16 %v2269
        %v2302 = vunpack.c.l.b16 %v2270
        %v2303 = vunpack.c.l.b16 %v2271
        %v2304 = vunpack.c.l.b16 %v2272
        %v2305 = vunpack.c.l.b16 %v2273
        %v2306 = vunpack.c.l.b16 %v2274
        %v2307 = vunpack.c.l.b16 %v2275
        %v2308 = vunpack.c.l.b16 %v2276
        %v2309 = vunpack.c.l.b16 %v2277
        %v2310 = vunpack.c.l.b16 %v2278
        %v2311 = vunpack.c.l.b16 %v2279
        %v2312 = vunpack.c.l.b16 %v2280
        %v2313 = vunpack.c.l.b16 %v2281
        %v2314 = vunpack.c.l.b16 %v2282
        %v2315 = vpack.c.b16 %v2300, %v2299
        %v2316 = vpack.c.b16 %v2302, %v2301
        %v2317 = vpack.c.b16 %v2304, %v2303
        %v2318 = vpack.c.b16 %v2306, %v2305
        %v2319 = vpack.c.b16 %v2308, %v2307
        %v2320 = vpack.c.b16 %v2310, %v2309
        %v2321 = vpack.c.b16 %v2312, %v2311
        %v2322 = vpack.c.b16 %v2314, %v2313
        %2331 = vmatpush.bf16.msra.mxu0 %v2322
        %2332 = vmatpush.bf16.msra.mxu0 %v2321
        %2333 = vmatpush.bf16.msra.mxu0 %v2320
        %2334 = vmatpush.bf16.msra.mxu0 %v2319
        %2335 = vmatpush.bf16.msra.mxu0 %v2318
        %2336 = vmatpush.bf16.msra.mxu0 %v2317
        %2337 = vmatpush.bf16.msra.mxu0 %v2316
        %2338 = vmatpush.bf16.msra.mxu0 %v2315
        %2339 = vmatmul.bf16.gmra.mxu0 %v2261
        %v2340 = vpop.f32.mrf.mxu0
        %v2341 = vadd.f32 0.0, %v2340
        %v2342 = vpop.f32.mrf.mxu0
        %v2343 = vadd.f32 0.0, %v2342
        %2344 = vmatmul.bf16.gmra.mxu0 %v2262
        %v2345 = vpop.f32.mrf.mxu0
        %v2346 = vadd.f32 0.0, %v2345
        %v2347 = vpop.f32.mrf.mxu0
        %v2348 = vadd.f32 0.0, %v2347
        %2349 = vmatmul.bf16.gmra.mxu0 %v2263
        %v2350 = vpop.f32.mrf.mxu0
        %v2351 = vadd.f32 0.0, %v2350
        %v2352 = vpop.f32.mrf.mxu0
        %v2353 = vadd.f32 0.0, %v2352
        %2354 = vmatmul.bf16.gmra.mxu0 %v2264
        %v2355 = vpop.f32.mrf.mxu0
        %v2356 = vadd.f32 0.0, %v2355
        %v2357 = vpop.f32.mrf.mxu0
        %v2358 = vadd.f32 0.0, %v2357
        %2359 = vmatmul.bf16.gmra.mxu0 %v2265
        %v2360 = vpop.f32.mrf.mxu0
        %v2361 = vadd.f32 0.0, %v2360
        %v2362 = vpop.f32.mrf.mxu0
        %v2363 = vadd.f32 0.0, %v2362
        %2364 = vdwg.mxu0
        %v2365 = vadd.f32 %v2241, %v2341
        %v2366 = vadd.f32 %v2242, %v2343
        %v2367 = vadd.f32 %v2243, %v2346
        %v2368 = vadd.f32 %v2244, %v2348
        %v2369 = vadd.f32 %v2245, %v2351
        %v2370 = vadd.f32 %v2246, %v2353
        %v2371 = vadd.f32 %v2247, %v2356
        %v2372 = vadd.f32 %v2248, %v2358
        %v2373 = vadd.f32 %v2249, %v2361
        %v2374 = vadd.f32 %v2250, %v2363
        %v2375 = vld [vmem:[#allocation3 + $0x16] sm:$0xff]
        %v2376 = vld [vmem:[#allocation3 + $0x1e] sm:$0xff]
        %v2377 = vld [vmem:[#allocation3 + $0x26] sm:$0xff]
        %v2378 = vld [vmem:[#allocation3 + $0x2e] sm:$0xff]
        %v2379 = vld [vmem:[#allocation3 + $0x36] sm:$0xff]
        %v2380 = vld [vmem:[#allocation3 + $0x3e] sm:$0xff]
        %v2381 = vld [vmem:[#allocation3 + $0x46] sm:$0xff]
        %v2382 = vld [vmem:[#allocation3 + $0x4e] sm:$0xff]
        %v2383 = vld [vmem:[#allocation3 + $0x56] sm:$0xff]
        %v2384 = vld [vmem:[#allocation3 + $0x5e] sm:$0xff]
        %v2385 = vpack.c.bf16 %v2376, %v2375
        %v2386 = vpack.c.bf16 %v2378, %v2377
        %v2387 = vpack.c.bf16 %v2380, %v2379
        %v2388 = vpack.c.bf16 %v2382, %v2381
        %v2389 = vpack.c.bf16 %v2384, %v2383
        %s2390 = scalar_lea.vmem [#allocation9], 512
        %v2391 = vld [vmem:[%s2390] sm:$0xf]
        %v2392 = vld [vmem:[%s2390 + $0x4] sm:$0xf]
        %v2393 = vld [vmem:[%s2390 + $0x8] sm:$0xf]
        %v2394 = vld [vmem:[%s2390 + $0xc] sm:$0xf]
        %v2395 = vld [vmem:[%s2390 + $0x10] sm:$0xf]
        %v2396 = vld [vmem:[%s2390 + $0x14] sm:$0xf]
        %v2397 = vld [vmem:[%s2390 + $0x18] sm:$0xf]
        %v2398 = vld [vmem:[%s2390 + $0x1c] sm:$0xf]
        %v2399 = vld [vmem:[%s2390 + $0x20] sm:$0xf]
        %v2400 = vld [vmem:[%s2390 + $0x24] sm:$0xf]
        %v2401 = vld [vmem:[%s2390 + $0x28] sm:$0xf]
        %v2402 = vld [vmem:[%s2390 + $0x2c] sm:$0xf]
        %v2403 = vld [vmem:[%s2390 + $0x30] sm:$0xf]
        %v2404 = vld [vmem:[%s2390 + $0x34] sm:$0xf]
        %v2405 = vld [vmem:[%s2390 + $0x38] sm:$0xf]
        %v2406 = vld [vmem:[%s2390 + $0x3c] sm:$0xf]
        %v2423 = vunpack.c.l.b16 %v2391
        %v2424 = vunpack.c.l.b16 %v2392
        %v2425 = vunpack.c.l.b16 %v2393
        %v2426 = vunpack.c.l.b16 %v2394
        %v2427 = vunpack.c.l.b16 %v2395
        %v2428 = vunpack.c.l.b16 %v2396
        %v2429 = vunpack.c.l.b16 %v2397
        %v2430 = vunpack.c.l.b16 %v2398
        %v2431 = vunpack.c.l.b16 %v2399
        %v2432 = vunpack.c.l.b16 %v2400
        %v2433 = vunpack.c.l.b16 %v2401
        %v2434 = vunpack.c.l.b16 %v2402
        %v2435 = vunpack.c.l.b16 %v2403
        %v2436 = vunpack.c.l.b16 %v2404
        %v2437 = vunpack.c.l.b16 %v2405
        %v2438 = vunpack.c.l.b16 %v2406
        %v2439 = vpack.c.b16 %v2424, %v2423
        %v2440 = vpack.c.b16 %v2426, %v2425
        %v2441 = vpack.c.b16 %v2428, %v2427
        %v2442 = vpack.c.b16 %v2430, %v2429
        %v2443 = vpack.c.b16 %v2432, %v2431
        %v2444 = vpack.c.b16 %v2434, %v2433
        %v2445 = vpack.c.b16 %v2436, %v2435
        %v2446 = vpack.c.b16 %v2438, %v2437
        %2455 = vmatpush.bf16.msra.mxu0 %v2446
        %2456 = vmatpush.bf16.msra.mxu0 %v2445
        %2457 = vmatpush.bf16.msra.mxu0 %v2444
        %2458 = vmatpush.bf16.msra.mxu0 %v2443
        %2459 = vmatpush.bf16.msra.mxu0 %v2442
        %2460 = vmatpush.bf16.msra.mxu0 %v2441
        %2461 = vmatpush.bf16.msra.mxu0 %v2440
        %2462 = vmatpush.bf16.msra.mxu0 %v2439
        %2463 = vmatmul.bf16.gmra.mxu0 %v2385
        %v2464 = vpop.f32.mrf.mxu0
        %v2465 = vadd.f32 0.0, %v2464
        %v2466 = vpop.f32.mrf.mxu0
        %v2467 = vadd.f32 0.0, %v2466
        %2468 = vmatmul.bf16.gmra.mxu0 %v2386
        %v2469 = vpop.f32.mrf.mxu0
        %v2470 = vadd.f32 0.0, %v2469
        %v2471 = vpop.f32.mrf.mxu0
        %v2472 = vadd.f32 0.0, %v2471
        %2473 = vmatmul.bf16.gmra.mxu0 %v2387
        %v2474 = vpop.f32.mrf.mxu0
        %v2475 = vadd.f32 0.0, %v2474
        %v2476 = vpop.f32.mrf.mxu0
        %v2477 = vadd.f32 0.0, %v2476
        %2478 = vmatmul.bf16.gmra.mxu0 %v2388
        %v2479 = vpop.f32.mrf.mxu0
        %v2480 = vadd.f32 0.0, %v2479
        %v2481 = vpop.f32.mrf.mxu0
        %v2482 = vadd.f32 0.0, %v2481
        %2483 = vmatmul.bf16.gmra.mxu0 %v2389
        %v2484 = vpop.f32.mrf.mxu0
        %v2485 = vadd.f32 0.0, %v2484
        %v2486 = vpop.f32.mrf.mxu0
        %v2487 = vadd.f32 0.0, %v2486
        %2488 = vdwg.mxu0
        %v2489 = vadd.f32 %v2365, %v2465
        %v2490 = vadd.f32 %v2366, %v2467
        %v2491 = vadd.f32 %v2367, %v2470
        %v2492 = vadd.f32 %v2368, %v2472
        %v2493 = vadd.f32 %v2369, %v2475
        %v2494 = vadd.f32 %v2370, %v2477
        %v2495 = vadd.f32 %v2371, %v2480
        %v2496 = vadd.f32 %v2372, %v2482
        %v2497 = vadd.f32 %v2373, %v2485
        %v2498 = vadd.f32 %v2374, %v2487
        %v2499 = vld [vmem:[%s5] sm:$0x1]
        %v2501 = vperm.slane %v2499, 0
        %v2503 = vmul.f32 %v2489, %v2501
        %v2504 = vmul.f32 %v2490, %v2501
        %v2505 = vmul.f32 %v2491, %v2501
        %v2506 = vmul.f32 %v2492, %v2501
        %v2507 = vmul.f32 %v2493, %v2501
        %v2508 = vmul.f32 %v2494, %v2501
        %v2509 = vmul.f32 %v2495, %v2501
        %v2510 = vmul.f32 %v2496, %v2501
        %v2511 = vmul.f32 %v2497, %v2501
        %v2512 = vmul.f32 %v2498, %v2501
        %v2513 = vld [vmem:[%s6] sm:$0x1]
        %v2515 = vperm.slane %v2513, 0
        %v2517 = vadd.f32 %v2503, %v2515
        %v2518 = vadd.f32 %v2504, %v2515
        %v2519 = vadd.f32 %v2505, %v2515
        %v2520 = vadd.f32 %v2506, %v2515
        %v2521 = vadd.f32 %v2507, %v2515
        %v2522 = vadd.f32 %v2508, %v2515
        %v2523 = vadd.f32 %v2509, %v2515
        %v2524 = vadd.f32 %v2510, %v2515
        %v2525 = vadd.f32 %v2511, %v2515
        %v2526 = vadd.f32 %v2512, %v2515
        %v2527 = vmax.f32 %v2517, 0.0
        %v2528 = vmax.f32 %v2518, 0.0
        %v2529 = vmax.f32 %v2519, 0.0
        %v2530 = vmax.f32 %v2520, 0.0
        %v2531 = vmax.f32 %v2521, 0.0
        %v2532 = vmax.f32 %v2522, 0.0
        %v2533 = vmax.f32 %v2523, 0.0
        %v2534 = vmax.f32 %v2524, 0.0
        %v2535 = vmax.f32 %v2525, 0.0
        %v2536 = vmax.f32 %v2526, 0.0
        %2537 = vst [vmem:[%s331] sm:$0xff] %v2527
        %2538 = vst [vmem:[%s331 + $0x8] sm:$0xff] %v2528
        %2539 = vst [vmem:[%s331 + $0x10] sm:$0xff] %v2529
        %2540 = vst [vmem:[%s331 + $0x18] sm:$0xff] %v2530
        %2541 = vst [vmem:[%s331 + $0x20] sm:$0xff] %v2531
        %2542 = vst [vmem:[%s331 + $0x28] sm:$0xff] %v2532
        %2543 = vst [vmem:[%s331 + $0x30] sm:$0xff] %v2533
        %2544 = vst [vmem:[%s331 + $0x38] sm:$0xff] %v2534
        %2545 = vst [vmem:[%s331 + $0x40] sm:$0xff] %v2535
        %2546 = vst [vmem:[%s331 + $0x48] sm:$0xff] %v2536
        %s2547 = sand.u32 %s185, 1
        %s2548 = scalar_lea.sflag [#allocation6], %s2547
        %s2549 = sand.u32 %s185, 1
        %s2550 = smul.addr %s2549, 80
        %s2551 = scalar_lea.vmem [#allocation10], %s2550
        // Predicated region
        $region61: #{tpu_custom_call.1} parent=47 // pred_check
          %p2552 = pneg %p195
        $region62: #{tpu_custom_call.1} parent=47 // pred_check_branch
          %2554 = sbr.rel (%p2552) target = $region64
        $region63: #{tpu_custom_call.1} parent=47 // pred_region
          %2556 = vsyncadd %s2548, 0
          %s2557 = smul.addr %s25, 10
          %s2558 = smul.addr %s2557, 8
          %s2559 = scalar_lea.hbm %s7, %s2558
          %s2560 = sshll.u32 %s2551, 4
          %s2561 = int_to_ptr.vmem [resolvable:$true] %s2560
          %s2562 = sshll.u32 %s2559, 4
          %s2563 = int_to_ptr.hbm [resolvable:$true] %s2562
          %2568 = dma.vmem_to_hbm [thread:$0]  %s2561, 1280, %s2563, %s2548, 128, 128, 8
        $region64: #{tpu_custom_call.1} parent=47 // pred_fallthru
          _
      $region48: #{tpu_custom_call.1} parent=5 // pred_fallthru
        _
      %p2569 = scmp.le.s32.totalorder 2, %s20
      // Predicated region
      $region65: #{tpu_custom_call.1} parent=5 // pred_check
        %p2570 = pneg %p2569
      $region66: #{tpu_custom_call.1} parent=5 // pred_check_branch
        %2572 = sbr.rel (%p2570) target = $region68
      $region67: #{tpu_custom_call.1} parent=5 // pred_region
        %s2573 = ssub.s32 %s20, 2
        // Predicated region
        $region69: #{tpu_custom_call.1} parent=67 // pred_check
          %p2574 = pneg %p201
        $region70: #{tpu_custom_call.1} parent=67 // pred_check_branch
          %2576 = sbr.rel (%p2574) target = $region72
        $region71: #{tpu_custom_call.1} parent=67 // pred_region
          %s2577 = sand.u32 %s186, 1
          %s2578 = scalar_lea.sflag [#allocation6], %s2577
          %s2579 = sand.u32 %s186, 1
          %s2580 = smul.addr %s2579, 80
          %s2581 = scalar_lea.vmem [#allocation10], %s2580
          %2583 = dma.done %s2578, 1280
        $region72: #{tpu_custom_call.1} parent=67 // pred_fallthru
          _
      $region68: #{tpu_custom_call.1} parent=5 // pred_fallthru
        _
    $region6: #{tpu_custom_call.1} parent=1 // loop_footer
      %s24 = sadd.s32 1, %s20
    $region7: #{tpu_custom_call.1} parent=1 // loop_footer_branch
      %19 = sbr.rel target = $region3
    $region8: #{tpu_custom_call.1} parent=1 // loop_exit
      _
    %2584 = vsyncpa [#allocation5], 1
    %s2585 = scalar_lea.sflag [#allocation5], 1
    %2586 = vsyncpa %s2585, 1
    %2587 = vsyncpa [#allocation8], 1
    %2588 = vsyncpa [#allocation6], 1
    %s2589 = scalar_lea.sflag [#allocation6], 1
    %2590 = vsyncpa %s2589, 1

</llo_original>
